<compile_context>
chip_gen: v7x
topology: tpu7x:2x2x1
jax: 0.10.0
libtpu: 0.0.40
codegen_flags: <defaults>
</compile_context>

<pallas_src>
import functools

import jax
import jax.numpy as jnp
from jax.experimental import pallas as pl
from jax.experimental.pallas import tpu as pltpu


def _round_up(x, m):
    return (x + m - 1) // m * m


# ----------------------------------------------------------------------------
# Fused kernel: embedding gather + RNN recurrence + output projection +
# log_softmax for one chunk of `chunk` timesteps.
#   ids_ref   : (Tp*B,)      int32, SMEM (scalar prefetch)
#   table_ref : (vocab, H)   table_proj = E @ W_ih + b_ih + b_hh  (resident VMEM)
#   w_hh_ref  : (H, H)       resident VMEM
#   w_out_ref : (H, Vp)      zero-padded columns, resident VMEM
#   b_out_ref : (1, Vp)      padded columns = -1e30, resident VMEM
#   out_ref   : (chunk, B, Vp) lane-dense log-prob tile for this chunk
#   h_carry   : (B, H)       hidden state carried across chunks (VMEM scratch)
#   hs_chunk  : (chunk, B, H) this chunk's hidden states (VMEM scratch)
# ----------------------------------------------------------------------------
def _fused_rnn_kernel(ids_ref, table_ref, w_hh_ref, w_out_ref, b_out_ref,
                      out_ref, h_carry, hs_chunk, *, seq_len, batch, chunk):
    c = pl.program_id(0)

    @pl.when(c == 0)
    def _():
        h_carry[...] = jnp.zeros_like(h_carry)

    w_hh = w_hh_ref[...]            # (H, H), loaded once per chunk
    t0 = c * chunk                  # global timestep offset of this chunk
    masked = (seq_len % chunk) != 0  # static: only trace the mask if T was padded

    def step(t, h):
        g = t0 + t
        # Fused embedding gather: xp_t = table_proj[ids[g, :]] -> (B, H)
        rows = [table_ref[pl.ds(ids_ref[g * batch + b], 1), :]
                for b in range(batch)]
        xp_t = jnp.concatenate(rows, axis=0)                       # (B, H)
        h_new = jnp.tanh(xp_t + jnp.dot(h, w_hh,
                                        preferred_element_type=jnp.float32))
        if masked:
            # Padded trailing steps keep the carry unchanged (state stays exact).
            h_new = jnp.where(g < seq_len, h_new, h)
        hs_chunk[t] = h_new
        return h_new

    h_last = jax.lax.fori_loop(0, chunk, step, h_carry[...],
                               unroll=min(8, chunk))
    h_carry[...] = h_last

    # Chunk epilogue: one batched projection + log_softmax, lane-dense store.
    hs = hs_chunk[...]                                             # (chunk, B, H)
    logits = jax.lax.dot_general(
        hs, w_out_ref[...],
        dimension_numbers=(((2,), (0,)), ((), ())),
        preferred_element_type=jnp.float32) + b_out_ref[...]       # (chunk, B, Vp)
    m = jnp.max(logits, axis=-1, keepdims=True)
    shifted = logits - m
    lse = jnp.log(jnp.sum(jnp.exp(shifted), axis=-1, keepdims=True))
    out_ref[...] = (shifted - lse).astype(out_ref.dtype)


# ----------------------------------------------------------------------------
# Full forward
# ----------------------------------------------------------------------------
def char_seq_stateful_forward(ids, params, *, max_chunk=256):
    """ids: (T, B) int32. Returns (T*B, vocab) log-probabilities."""
    T, B = ids.shape
    E = params["embedding"]                     # (vocab, F)
    vocab = E.shape[0]
    H = params["w_hh"].shape[0]
    V = params["w_out"].shape[1]
    Vp = _round_up(V, 128)                      # lane-dense vocab dimension

    # Time-independent input projection folded into the embedding table once:
    #   xp_t = x_t @ W_ih + b_ih + b_hh   (gathered per token inside the kernel).
    table_proj = (E @ params["w_ih"] + params["b_ih"]
                  + params["b_hh"]).astype(jnp.float32)            # (vocab, H)

    w_out = jnp.pad(params["w_out"],
                    ((0, 0), (0, Vp - V))).astype(jnp.float32)     # (H, Vp)
    b_out = jnp.pad(params["b_out"], ((0, 0), (0, Vp - V)),
                    constant_values=-1e30).astype(jnp.float32)     # (1, Vp)

    # Chunking: prefer chunk == T (single grid step, no time padding) for
    # moderate T; otherwise chunk = max_chunk with in-kernel masking.
    chunk = T if T <= max_chunk else max_chunk
    n_chunks = (T + chunk - 1) // chunk
    Tp = n_chunks * chunk

    ids_flat = ids.reshape(-1).astype(jnp.int32)                   # 1D SMEM (cheap padding)
    if Tp != T:
        ids_flat = jnp.pad(ids_flat, (0, (Tp - T) * B))            # token 0; masked in-kernel

    kernel = functools.partial(_fused_rnn_kernel,
                               seq_len=T, batch=B, chunk=chunk)

    # Rough VMEM budget (resident weights + double-buffered output + scratch);
    # only raise the scoped limit above the platform default when needed.
    vmem_bytes = 4 * (vocab * H + H * H + H * Vp + Vp
                      + 2 * chunk * B * Vp + chunk * B * H + B * H)
    cp_kwargs = dict(dimension_semantics=("arbitrary",))           # serial carry
    if 2 * vmem_bytes > (16 << 20):
        cp_kwargs["vmem_limit_bytes"] = int(min(2 * vmem_bytes, 64 << 20))

    out = pl.pallas_call(
        kernel,
        out_shape=jax.ShapeDtypeStruct((Tp, B, Vp), jnp.float32),
        grid_spec=pltpu.PrefetchScalarGridSpec(
            num_scalar_prefetch=1,
            grid=(n_chunks,),
            in_specs=[
                pl.BlockSpec((vocab, H), lambda c, ids_s: (0, 0)),
                pl.BlockSpec((H, H), lambda c, ids_s: (0, 0)),
                pl.BlockSpec((H, Vp), lambda c, ids_s: (0, 0)),
                pl.BlockSpec((1, Vp), lambda c, ids_s: (0, 0)),
            ],
            out_specs=pl.BlockSpec((chunk, B, Vp), lambda c, ids_s: (c, 0, 0)),
            scratch_shapes=[
                pltpu.VMEM((B, H), jnp.float32),        # hidden carry
                pltpu.VMEM((chunk, B, H), jnp.float32),  # chunk hidden states
            ],
        ),
        compiler_params=pltpu.CompilerParams(**cp_kwargs),
    )(ids_flat, table_proj, params["w_hh"], w_out, b_out)

    out = out[:T, :, :V]                        # drop vocab-lane (and time) padding
    return out.reshape(T * B, V)                # == .view(-1, vocab)


def char_seq_stateful_reference(ids, params):
    """Pure-JAX reference mirroring the PyTorch semantics."""
    emb = jnp.take(params["embedding"], ids, axis=0)               # (T, B, F)
    B = emb.shape[1]
    H = params["w_hh"].shape[0]

    def step(h, x_t):
        h_new = jnp.tanh(x_t @ params["w_ih"] + params["b_ih"]
                         + h @ params["w_hh"] + params["b_hh"])
        return h_new, h_new

    h0 = jnp.zeros((B, H), jnp.float32)
    _, hs = jax.lax.scan(step, h0, emb)                            # (T, B, H)
    logits = hs @ params["w_out"] + params["b_out"]                # (T, B, V)
    logp = jax.nn.log_softmax(logits, axis=-1)
    return logp.reshape(-1, params["w_out"].shape[1])


def init_params(key, vocab_size, n_fac, n_hidden):
    ks = jax.random.split(key, 10)
    s_rnn = 1.0 / jnp.sqrt(n_hidden)
    s_out = 1.0 / jnp.sqrt(n_hidden)
    params = {
        # nn.Embedding(vocab, n_fac)
        "embedding": jax.random.normal(ks[0], (vocab_size, n_fac), jnp.float32),
        # nn.RNN weights, stored transposed: (in, out)
        "w_ih": jax.random.uniform(ks[1], (n_fac, n_hidden), jnp.float32, -s_rnn, s_rnn),
        "b_ih": jax.random.uniform(ks[2], (1, n_hidden), jnp.float32, -s_rnn, s_rnn),
        "w_hh": jax.random.uniform(ks[3], (n_hidden, n_hidden), jnp.float32, -s_rnn, s_rnn),
        "b_hh": jax.random.uniform(ks[4], (1, n_hidden), jnp.float32, -s_rnn, s_rnn),
        # nn.Linear(n_hidden, vocab), stored transposed
        "w_out": jax.random.uniform(ks[5], (n_hidden, vocab_size), jnp.float32, -s_out, s_out),
        "b_out": jax.random.uniform(ks[6], (1, vocab_size), jnp.float32, -s_out, s_out),
        # l_in / l_hidden: present in the module but unused by forward()
        "w_l_in": jax.random.uniform(ks[7], (n_fac, n_hidden), jnp.float32, -s_rnn, s_rnn),
        "w_l_hidden": jax.random.uniform(ks[8], (n_hidden, n_hidden), jnp.float32, -s_rnn, s_rnn),
    }
    return params


if __name__ == "__main__":
    vocab_size, n_fac, n_hidden = 16, 8, 32
    seq_len, batch = 8, 4

    key = jax.random.PRNGKey(0)
    k_ids, k_params = jax.random.split(key)

    params = init_params(k_params, vocab_size, n_fac, n_hidden)
    ids = jax.random.randint(k_ids, (seq_len, batch), 0, vocab_size, dtype=jnp.int32)

    out = jax.block_until_ready(char_seq_stateful_forward(ids, params))
    ref = jax.block_until_ready(char_seq_stateful_reference(ids, params))

    assert out.shape == (seq_len * batch, vocab_size), out.shape
    assert jnp.allclose(out, ref, atol=1e-4, rtol=1e-4), float(jnp.abs(out - ref).max())
    # log_softmax rows must sum to ~1 in prob space
    assert jnp.allclose(jnp.exp(out).sum(-1), 1.0, atol=1e-4)

    print("KERNEL_OK")
</pallas_src>

<mosaic_0001>
module attributes {stable_mosaic.version = 11 : i64} {
  func.func @_fused_rnn_kernel(%arg0: i32, %arg1: memref<32xi32, #tpu.memory_space<smem>>, %arg2: memref<16x32xf32, #tpu.memory_space<vmem>>, %arg3: memref<32x32xf32, #tpu.memory_space<vmem>>, %arg4: memref<32x128xf32, #tpu.memory_space<vmem>>, %arg5: memref<1x128xf32, #tpu.memory_space<vmem>>, %arg6: memref<8x4x128xf32, #tpu.memory_space<vmem>>, %arg7: memref<4x32xf32, #tpu.memory_space<vmem>>, %arg8: memref<8x4x32xf32, #tpu.memory_space<vmem>>) attributes {dimension_semantics = [#tpu.dimension_semantics<arbitrary>], iteration_bounds = array<i64: 1>, scalar_prefetch = 1 : i64, scratch_operands = 2 : i64, tpu.core_type = #tpu.core_type<tc>, window_params = [{pipeline_mode = #tpu.pipeline_mode<synchronous>, transform_indices = @transform_0, window_bounds = array<i64: 16, 32>}, {pipeline_mode = #tpu.pipeline_mode<synchronous>, transform_indices = @transform_1, window_bounds = array<i64: 32, 32>}, {pipeline_mode = #tpu.pipeline_mode<synchronous>, transform_indices = @transform_2, window_bounds = array<i64: 32, 128>}, {pipeline_mode = #tpu.pipeline_mode<synchronous>, transform_indices = @transform_3, window_bounds = array<i64: 1, 128>}, {transform_indices = @transform_4, window_bounds = array<i64: 8, 4, 128>}]} {
    %c0_i32 = arith.constant 0 : i32
    %0 = arith.cmpi eq, %arg0, %c0_i32 : i32
    %1 = arith.extui %0 : i1 to i32
    %c0_i32_0 = arith.constant 0 : i32
    %2 = arith.cmpi ne, %1, %c0_i32_0 : i32
    scf.if %2 {
      %cst_140 = arith.constant 0.000000e+00 : f32
      %289 = vector.broadcast %cst_140 : f32 to vector<4x32xf32>
      %c0_141 = arith.constant 0 : index
      %c0_142 = arith.constant 0 : index
      %290 = vector.load %arg7[%c0_141, %c0_142] : memref<4x32xf32, #tpu.memory_space<vmem>>, vector<4x32xf32>
      tpu.vector_store %arg7[%c0_141, %c0_142], %289 {strides = array<i32>} : memref<4x32xf32, #tpu.memory_space<vmem>>, vector<4x32xf32>,
    } else {
    }
    %c0 = arith.constant 0 : index
    %c0_1 = arith.constant 0 : index
    %3 = vector.load %arg3[%c0, %c0_1] : memref<32x32xf32, #tpu.memory_space<vmem>>, vector<32x32xf32>
    %c8_i32 = arith.constant 8 : i32
    %4 = arith.muli %arg0, %c8_i32 : i32
    %c0_2 = arith.constant 0 : index
    %c0_3 = arith.constant 0 : index
    %5 = vector.load %arg7[%c0_2, %c0_3] : memref<4x32xf32, #tpu.memory_space<vmem>>, vector<4x32xf32>
    %c0_i32_4 = arith.constant 0 : i32
    %6 = arith.addi %4, %c0_i32_4 : i32
    %c4_i32 = arith.constant 4 : i32
    %7 = arith.muli %6, %c4_i32 : i32
    %c0_i32_5 = arith.constant 0 : i32
    %8 = arith.addi %7, %c0_i32_5 : i32
    %9 = arith.index_cast %8 : i32 to index
    %10 = memref.load %arg1[%9] : memref<32xi32, #tpu.memory_space<smem>>
    %11 = arith.index_cast %10 : i32 to index
    %c0_6 = arith.constant 0 : index
    %12 = vector.load %arg2[%11, %c0_6] : memref<16x32xf32, #tpu.memory_space<vmem>>, vector<1x32xf32>
    %c4_i32_7 = arith.constant 4 : i32
    %13 = arith.muli %6, %c4_i32_7 : i32
    %c1_i32 = arith.constant 1 : i32
    %14 = arith.addi %13, %c1_i32 : i32
    %15 = arith.index_cast %14 : i32 to index
    %16 = memref.load %arg1[%15] : memref<32xi32, #tpu.memory_space<smem>>
    %17 = arith.index_cast %16 : i32 to index
    %c0_8 = arith.constant 0 : index
    %18 = vector.load %arg2[%17, %c0_8] : memref<16x32xf32, #tpu.memory_space<vmem>>, vector<1x32xf32>
    %c4_i32_9 = arith.constant 4 : i32
    %19 = arith.muli %6, %c4_i32_9 : i32
    %c2_i32 = arith.constant 2 : i32
    %20 = arith.addi %19, %c2_i32 : i32
    %21 = arith.index_cast %20 : i32 to index
    %22 = memref.load %arg1[%21] : memref<32xi32, #tpu.memory_space<smem>>
    %23 = arith.index_cast %22 : i32 to index
    %c0_10 = arith.constant 0 : index
    %24 = vector.load %arg2[%23, %c0_10] : memref<16x32xf32, #tpu.memory_space<vmem>>, vector<1x32xf32>
    %c4_i32_11 = arith.constant 4 : i32
    %25 = arith.muli %6, %c4_i32_11 : i32
    %c3_i32 = arith.constant 3 : i32
    %26 = arith.addi %25, %c3_i32 : i32
    %27 = arith.index_cast %26 : i32 to index
    %28 = memref.load %arg1[%27] : memref<32xi32, #tpu.memory_space<smem>>
    %29 = arith.index_cast %28 : i32 to index
    %c0_12 = arith.constant 0 : index
    %30 = vector.load %arg2[%29, %c0_12] : memref<16x32xf32, #tpu.memory_space<vmem>>, vector<1x32xf32>
    %31 = tpu.concatenate %12, %18, %24, %30 in 0 : vector<1x32xf32>, vector<1x32xf32>, vector<1x32xf32>, vector<1x32xf32> -> vector<4x32xf32>
    %cst = arith.constant dense<0.000000e+00> : vector<4x32xf32>
    %32 = tpu.matmul %5, %3, %cst {dimension_numbers = #tpu.dot_dimension_numbers<[1], [0], [0], [1], [0, 0, 1, 1], [], []>} : vector<4x32xf32>, vector<32x32xf32>, vector<4x32xf32> -> vector<4x32xf32>
    %33 = arith.addf %31, %32 : vector<4x32xf32>
    %34 = math.tanh %33 : vector<4x32xf32>
    %35 = arith.index_cast %c0_i32_4 : i32 to index
    %c0_13 = arith.constant 0 : index
    %c0_14 = arith.constant 0 : index
    %36 = vector.load %arg8[%35, %c0_13, %c0_14] : memref<8x4x32xf32, #tpu.memory_space<vmem>>, vector<1x4x32xf32>
    %37 = vector.shape_cast %36 : vector<1x4x32xf32> to vector<4x32xf32>
    %38 = vector.shape_cast %34 : vector<4x32xf32> to vector<1x4x32xf32>
    tpu.vector_store %arg8[%35, %c0_13, %c0_14], %38 {strides = array<i32>} : memref<8x4x32xf32, #tpu.memory_space<vmem>>, vector<1x4x32xf32>,
    %c1_i32_15 = arith.constant 1 : i32
    %39 = arith.addi %4, %c1_i32_15 : i32
    %c4_i32_16 = arith.constant 4 : i32
    %40 = arith.muli %39, %c4_i32_16 : i32
    %c0_i32_17 = arith.constant 0 : i32
    %41 = arith.addi %40, %c0_i32_17 : i32
    %42 = arith.index_cast %41 : i32 to index
    %43 = memref.load %arg1[%42] : memref<32xi32, #tpu.memory_space<smem>>
    %44 = arith.index_cast %43 : i32 to index
    %c0_18 = arith.constant 0 : index
    %45 = vector.load %arg2[%44, %c0_18] : memref<16x32xf32, #tpu.memory_space<vmem>>, vector<1x32xf32>
    %c4_i32_19 = arith.constant 4 : i32
    %46 = arith.muli %39, %c4_i32_19 : i32
    %c1_i32_20 = arith.constant 1 : i32
    %47 = arith.addi %46, %c1_i32_20 : i32
    %48 = arith.index_cast %47 : i32 to index
    %49 = memref.load %arg1[%48] : memref<32xi32, #tpu.memory_space<smem>>
    %50 = arith.index_cast %49 : i32 to index
    %c0_21 = arith.constant 0 : index
    %51 = vector.load %arg2[%50, %c0_21] : memref<16x32xf32, #tpu.memory_space<vmem>>, vector<1x32xf32>
    %c4_i32_22 = arith.constant 4 : i32
    %52 = arith.muli %39, %c4_i32_22 : i32
    %c2_i32_23 = arith.constant 2 : i32
    %53 = arith.addi %52, %c2_i32_23 : i32
    %54 = arith.index_cast %53 : i32 to index
    %55 = memref.load %arg1[%54] : memref<32xi32, #tpu.memory_space<smem>>
    %56 = arith.index_cast %55 : i32 to index
    %c0_24 = arith.constant 0 : index
    %57 = vector.load %arg2[%56, %c0_24] : memref<16x32xf32, #tpu.memory_space<vmem>>, vector<1x32xf32>
    %c4_i32_25 = arith.constant 4 : i32
    %58 = arith.muli %39, %c4_i32_25 : i32
    %c3_i32_26 = arith.constant 3 : i32
    %59 = arith.addi %58, %c3_i32_26 : i32
    %60 = arith.index_cast %59 : i32 to index
    %61 = memref.load %arg1[%60] : memref<32xi32, #tpu.memory_space<smem>>
    %62 = arith.index_cast %61 : i32 to index
    %c0_27 = arith.constant 0 : index
    %63 = vector.load %arg2[%62, %c0_27] : memref<16x32xf32, #tpu.memory_space<vmem>>, vector<1x32xf32>
    %64 = tpu.concatenate %45, %51, %57, %63 in 0 : vector<1x32xf32>, vector<1x32xf32>, vector<1x32xf32>, vector<1x32xf32> -> vector<4x32xf32>
    %cst_28 = arith.constant dense<0.000000e+00> : vector<4x32xf32>
    %65 = tpu.matmul %34, %3, %cst_28 {dimension_numbers = #tpu.dot_dimension_numbers<[1], [0], [0], [1], [0, 0, 1, 1], [], []>} : vector<4x32xf32>, vector<32x32xf32>, vector<4x32xf32> -> vector<4x32xf32>
    %66 = arith.addf %64, %65 : vector<4x32xf32>
    %67 = math.tanh %66 : vector<4x32xf32>
    %68 = arith.index_cast %c1_i32_15 : i32 to index
    %c0_29 = arith.constant 0 : index
    %c0_30 = arith.constant 0 : index
    %69 = vector.load %arg8[%68, %c0_29, %c0_30] : memref<8x4x32xf32, #tpu.memory_space<vmem>>, vector<1x4x32xf32>
    %70 = vector.shape_cast %69 : vector<1x4x32xf32> to vector<4x32xf32>
    %71 = vector.shape_cast %67 : vector<4x32xf32> to vector<1x4x32xf32>
    tpu.vector_store %arg8[%68, %c0_29, %c0_30], %71 {strides = array<i32>} : memref<8x4x32xf32, #tpu.memory_space<vmem>>, vector<1x4x32xf32>,
    %c2_i32_31 = arith.constant 2 : i32
    %72 = arith.addi %4, %c2_i32_31 : i32
    %c4_i32_32 = arith.constant 4 : i32
    %73 = arith.muli %72, %c4_i32_32 : i32
    %c0_i32_33 = arith.constant 0 : i32
    %74 = arith.addi %73, %c0_i32_33 : i32
    %75 = arith.index_cast %74 : i32 to index
    %76 = memref.load %arg1[%75] : memref<32xi32, #tpu.memory_space<smem>>
    %77 = arith.index_cast %76 : i32 to index
    %c0_34 = arith.constant 0 : index
    %78 = vector.load %arg2[%77, %c0_34] : memref<16x32xf32, #tpu.memory_space<vmem>>, vector<1x32xf32>
    %c4_i32_35 = arith.constant 4 : i32
    %79 = arith.muli %72, %c4_i32_35 : i32
    %c1_i32_36 = arith.constant 1 : i32
    %80 = arith.addi %79, %c1_i32_36 : i32
    %81 = arith.index_cast %80 : i32 to index
    %82 = memref.load %arg1[%81] : memref<32xi32, #tpu.memory_space<smem>>
    %83 = arith.index_cast %82 : i32 to index
    %c0_37 = arith.constant 0 : index
    %84 = vector.load %arg2[%83, %c0_37] : memref<16x32xf32, #tpu.memory_space<vmem>>, vector<1x32xf32>
    %c4_i32_38 = arith.constant 4 : i32
    %85 = arith.muli %72, %c4_i32_38 : i32
    %c2_i32_39 = arith.constant 2 : i32
    %86 = arith.addi %85, %c2_i32_39 : i32
    %87 = arith.index_cast %86 : i32 to index
    %88 = memref.load %arg1[%87] : memref<32xi32, #tpu.memory_space<smem>>
    %89 = arith.index_cast %88 : i32 to index
    %c0_40 = arith.constant 0 : index
    %90 = vector.load %arg2[%89, %c0_40] : memref<16x32xf32, #tpu.memory_space<vmem>>, vector<1x32xf32>
    %c4_i32_41 = arith.constant 4 : i32
    %91 = arith.muli %72, %c4_i32_41 : i32
    %c3_i32_42 = arith.constant 3 : i32
    %92 = arith.addi %91, %c3_i32_42 : i32
    %93 = arith.index_cast %92 : i32 to index
    %94 = memref.load %arg1[%93] : memref<32xi32, #tpu.memory_space<smem>>
    %95 = arith.index_cast %94 : i32 to index
    %c0_43 = arith.constant 0 : index
    %96 = vector.load %arg2[%95, %c0_43] : memref<16x32xf32, #tpu.memory_space<vmem>>, vector<1x32xf32>
    %97 = tpu.concatenate %78, %84, %90, %96 in 0 : vector<1x32xf32>, vector<1x32xf32>, vector<1x32xf32>, vector<1x32xf32> -> vector<4x32xf32>
    %cst_44 = arith.constant dense<0.000000e+00> : vector<4x32xf32>
    %98 = tpu.matmul %67, %3, %cst_44 {dimension_numbers = #tpu.dot_dimension_numbers<[1], [0], [0], [1], [0, 0, 1, 1], [], []>} : vector<4x32xf32>, vector<32x32xf32>, vector<4x32xf32> -> vector<4x32xf32>
    %99 = arith.addf %97, %98 : vector<4x32xf32>
    %100 = math.tanh %99 : vector<4x32xf32>
    %101 = arith.index_cast %c2_i32_31 : i32 to index
    %c0_45 = arith.constant 0 : index
    %c0_46 = arith.constant 0 : index
    %102 = vector.load %arg8[%101, %c0_45, %c0_46] : memref<8x4x32xf32, #tpu.memory_space<vmem>>, vector<1x4x32xf32>
    %103 = vector.shape_cast %102 : vector<1x4x32xf32> to vector<4x32xf32>
    %104 = vector.shape_cast %100 : vector<4x32xf32> to vector<1x4x32xf32>
    tpu.vector_store %arg8[%101, %c0_45, %c0_46], %104 {strides = array<i32>} : memref<8x4x32xf32, #tpu.memory_space<vmem>>, vector<1x4x32xf32>,
    %c3_i32_47 = arith.constant 3 : i32
    %105 = arith.addi %4, %c3_i32_47 : i32
    %c4_i32_48 = arith.constant 4 : i32
    %106 = arith.muli %105, %c4_i32_48 : i32
    %c0_i32_49 = arith.constant 0 : i32
    %107 = arith.addi %106, %c0_i32_49 : i32
    %108 = arith.index_cast %107 : i32 to index
    %109 = memref.load %arg1[%108] : memref<32xi32, #tpu.memory_space<smem>>
    %110 = arith.index_cast %109 : i32 to index
    %c0_50 = arith.constant 0 : index
    %111 = vector.load %arg2[%110, %c0_50] : memref<16x32xf32, #tpu.memory_space<vmem>>, vector<1x32xf32>
    %c4_i32_51 = arith.constant 4 : i32
    %112 = arith.muli %105, %c4_i32_51 : i32
    %c1_i32_52 = arith.constant 1 : i32
    %113 = arith.addi %112, %c1_i32_52 : i32
    %114 = arith.index_cast %113 : i32 to index
    %115 = memref.load %arg1[%114] : memref<32xi32, #tpu.memory_space<smem>>
    %116 = arith.index_cast %115 : i32 to index
    %c0_53 = arith.constant 0 : index
    %117 = vector.load %arg2[%116, %c0_53] : memref<16x32xf32, #tpu.memory_space<vmem>>, vector<1x32xf32>
    %c4_i32_54 = arith.constant 4 : i32
    %118 = arith.muli %105, %c4_i32_54 : i32
    %c2_i32_55 = arith.constant 2 : i32
    %119 = arith.addi %118, %c2_i32_55 : i32
    %120 = arith.index_cast %119 : i32 to index
    %121 = memref.load %arg1[%120] : memref<32xi32, #tpu.memory_space<smem>>
    %122 = arith.index_cast %121 : i32 to index
    %c0_56 = arith.constant 0 : index
    %123 = vector.load %arg2[%122, %c0_56] : memref<16x32xf32, #tpu.memory_space<vmem>>, vector<1x32xf32>
    %c4_i32_57 = arith.constant 4 : i32
    %124 = arith.muli %105, %c4_i32_57 : i32
    %c3_i32_58 = arith.constant 3 : i32
    %125 = arith.addi %124, %c3_i32_58 : i32
    %126 = arith.index_cast %125 : i32 to index
    %127 = memref.load %arg1[%126] : memref<32xi32, #tpu.memory_space<smem>>
    %128 = arith.index_cast %127 : i32 to index
    %c0_59 = arith.constant 0 : index
    %129 = vector.load %arg2[%128, %c0_59] : memref<16x32xf32, #tpu.memory_space<vmem>>, vector<1x32xf32>
    %130 = tpu.concatenate %111, %117, %123, %129 in 0 : vector<1x32xf32>, vector<1x32xf32>, vector<1x32xf32>, vector<1x32xf32> -> vector<4x32xf32>
    %cst_60 = arith.constant dense<0.000000e+00> : vector<4x32xf32>
    %131 = tpu.matmul %100, %3, %cst_60 {dimension_numbers = #tpu.dot_dimension_numbers<[1], [0], [0], [1], [0, 0, 1, 1], [], []>} : vector<4x32xf32>, vector<32x32xf32>, vector<4x32xf32> -> vector<4x32xf32>
    %132 = arith.addf %130, %131 : vector<4x32xf32>
    %133 = math.tanh %132 : vector<4x32xf32>
    %134 = arith.index_cast %c3_i32_47 : i32 to index
    %c0_61 = arith.constant 0 : index
    %c0_62 = arith.constant 0 : index
    %135 = vector.load %arg8[%134, %c0_61, %c0_62] : memref<8x4x32xf32, #tpu.memory_space<vmem>>, vector<1x4x32xf32>
    %136 = vector.shape_cast %135 : vector<1x4x32xf32> to vector<4x32xf32>
    %137 = vector.shape_cast %133 : vector<4x32xf32> to vector<1x4x32xf32>
    tpu.vector_store %arg8[%134, %c0_61, %c0_62], %137 {strides = array<i32>} : memref<8x4x32xf32, #tpu.memory_space<vmem>>, vector<1x4x32xf32>,
    %c4_i32_63 = arith.constant 4 : i32
    %138 = arith.addi %4, %c4_i32_63 : i32
    %c4_i32_64 = arith.constant 4 : i32
    %139 = arith.muli %138, %c4_i32_64 : i32
    %c0_i32_65 = arith.constant 0 : i32
    %140 = arith.addi %139, %c0_i32_65 : i32
    %141 = arith.index_cast %140 : i32 to index
    %142 = memref.load %arg1[%141] : memref<32xi32, #tpu.memory_space<smem>>
    %143 = arith.index_cast %142 : i32 to index
    %c0_66 = arith.constant 0 : index
    %144 = vector.load %arg2[%143, %c0_66] : memref<16x32xf32, #tpu.memory_space<vmem>>, vector<1x32xf32>
    %c4_i32_67 = arith.constant 4 : i32
    %145 = arith.muli %138, %c4_i32_67 : i32
    %c1_i32_68 = arith.constant 1 : i32
    %146 = arith.addi %145, %c1_i32_68 : i32
    %147 = arith.index_cast %146 : i32 to index
    %148 = memref.load %arg1[%147] : memref<32xi32, #tpu.memory_space<smem>>
    %149 = arith.index_cast %148 : i32 to index
    %c0_69 = arith.constant 0 : index
    %150 = vector.load %arg2[%149, %c0_69] : memref<16x32xf32, #tpu.memory_space<vmem>>, vector<1x32xf32>
    %c4_i32_70 = arith.constant 4 : i32
    %151 = arith.muli %138, %c4_i32_70 : i32
    %c2_i32_71 = arith.constant 2 : i32
    %152 = arith.addi %151, %c2_i32_71 : i32
    %153 = arith.index_cast %152 : i32 to index
    %154 = memref.load %arg1[%153] : memref<32xi32, #tpu.memory_space<smem>>
    %155 = arith.index_cast %154 : i32 to index
    %c0_72 = arith.constant 0 : index
    %156 = vector.load %arg2[%155, %c0_72] : memref<16x32xf32, #tpu.memory_space<vmem>>, vector<1x32xf32>
    %c4_i32_73 = arith.constant 4 : i32
    %157 = arith.muli %138, %c4_i32_73 : i32
    %c3_i32_74 = arith.constant 3 : i32
    %158 = arith.addi %157, %c3_i32_74 : i32
    %159 = arith.index_cast %158 : i32 to index
    %160 = memref.load %arg1[%159] : memref<32xi32, #tpu.memory_space<smem>>
    %161 = arith.index_cast %160 : i32 to index
    %c0_75 = arith.constant 0 : index
    %162 = vector.load %arg2[%161, %c0_75] : memref<16x32xf32, #tpu.memory_space<vmem>>, vector<1x32xf32>
    %163 = tpu.concatenate %144, %150, %156, %162 in 0 : vector<1x32xf32>, vector<1x32xf32>, vector<1x32xf32>, vector<1x32xf32> -> vector<4x32xf32>
    %cst_76 = arith.constant dense<0.000000e+00> : vector<4x32xf32>
    %164 = tpu.matmul %133, %3, %cst_76 {dimension_numbers = #tpu.dot_dimension_numbers<[1], [0], [0], [1], [0, 0, 1, 1], [], []>} : vector<4x32xf32>, vector<32x32xf32>, vector<4x32xf32> -> vector<4x32xf32>
    %165 = arith.addf %163, %164 : vector<4x32xf32>
    %166 = math.tanh %165 : vector<4x32xf32>
    %167 = arith.index_cast %c4_i32_63 : i32 to index
    %c0_77 = arith.constant 0 : index
    %c0_78 = arith.constant 0 : index
    %168 = vector.load %arg8[%167, %c0_77, %c0_78] : memref<8x4x32xf32, #tpu.memory_space<vmem>>, vector<1x4x32xf32>
    %169 = vector.shape_cast %168 : vector<1x4x32xf32> to vector<4x32xf32>
    %170 = vector.shape_cast %166 : vector<4x32xf32> to vector<1x4x32xf32>
    tpu.vector_store %arg8[%167, %c0_77, %c0_78], %170 {strides = array<i32>} : memref<8x4x32xf32, #tpu.memory_space<vmem>>, vector<1x4x32xf32>,
    %c5_i32 = arith.constant 5 : i32
    %171 = arith.addi %4, %c5_i32 : i32
    %c4_i32_79 = arith.constant 4 : i32
    %172 = arith.muli %171, %c4_i32_79 : i32
    %c0_i32_80 = arith.constant 0 : i32
    %173 = arith.addi %172, %c0_i32_80 : i32
    %174 = arith.index_cast %173 : i32 to index
    %175 = memref.load %arg1[%174] : memref<32xi32, #tpu.memory_space<smem>>
    %176 = arith.index_cast %175 : i32 to index
    %c0_81 = arith.constant 0 : index
    %177 = vector.load %arg2[%176, %c0_81] : memref<16x32xf32, #tpu.memory_space<vmem>>, vector<1x32xf32>
    %c4_i32_82 = arith.constant 4 : i32
    %178 = arith.muli %171, %c4_i32_82 : i32
    %c1_i32_83 = arith.constant 1 : i32
    %179 = arith.addi %178, %c1_i32_83 : i32
    %180 = arith.index_cast %179 : i32 to index
    %181 = memref.load %arg1[%180] : memref<32xi32, #tpu.memory_space<smem>>
    %182 = arith.index_cast %181 : i32 to index
    %c0_84 = arith.constant 0 : index
    %183 = vector.load %arg2[%182, %c0_84] : memref<16x32xf32, #tpu.memory_space<vmem>>, vector<1x32xf32>
    %c4_i32_85 = arith.constant 4 : i32
    %184 = arith.muli %171, %c4_i32_85 : i32
    %c2_i32_86 = arith.constant 2 : i32
    %185 = arith.addi %184, %c2_i32_86 : i32
    %186 = arith.index_cast %185 : i32 to index
    %187 = memref.load %arg1[%186] : memref<32xi32, #tpu.memory_space<smem>>
    %188 = arith.index_cast %187 : i32 to index
    %c0_87 = arith.constant 0 : index
    %189 = vector.load %arg2[%188, %c0_87] : memref<16x32xf32, #tpu.memory_space<vmem>>, vector<1x32xf32>
    %c4_i32_88 = arith.constant 4 : i32
    %190 = arith.muli %171, %c4_i32_88 : i32
    %c3_i32_89 = arith.constant 3 : i32
    %191 = arith.addi %190, %c3_i32_89 : i32
    %192 = arith.index_cast %191 : i32 to index
    %193 = memref.load %arg1[%192] : memref<32xi32, #tpu.memory_space<smem>>
    %194 = arith.index_cast %193 : i32 to index
    %c0_90 = arith.constant 0 : index
    %195 = vector.load %arg2[%194, %c0_90] : memref<16x32xf32, #tpu.memory_space<vmem>>, vector<1x32xf32>
    %196 = tpu.concatenate %177, %183, %189, %195 in 0 : vector<1x32xf32>, vector<1x32xf32>, vector<1x32xf32>, vector<1x32xf32> -> vector<4x32xf32>
    %cst_91 = arith.constant dense<0.000000e+00> : vector<4x32xf32>
    %197 = tpu.matmul %166, %3, %cst_91 {dimension_numbers = #tpu.dot_dimension_numbers<[1], [0], [0], [1], [0, 0, 1, 1], [], []>} : vector<4x32xf32>, vector<32x32xf32>, vector<4x32xf32> -> vector<4x32xf32>
    %198 = arith.addf %196, %197 : vector<4x32xf32>
    %199 = math.tanh %198 : vector<4x32xf32>
    %200 = arith.index_cast %c5_i32 : i32 to index
    %c0_92 = arith.constant 0 : index
    %c0_93 = arith.constant 0 : index
    %201 = vector.load %arg8[%200, %c0_92, %c0_93] : memref<8x4x32xf32, #tpu.memory_space<vmem>>, vector<1x4x32xf32>
    %202 = vector.shape_cast %201 : vector<1x4x32xf32> to vector<4x32xf32>
    %203 = vector.shape_cast %199 : vector<4x32xf32> to vector<1x4x32xf32>
    tpu.vector_store %arg8[%200, %c0_92, %c0_93], %203 {strides = array<i32>} : memref<8x4x32xf32, #tpu.memory_space<vmem>>, vector<1x4x32xf32>,
    %c6_i32 = arith.constant 6 : i32
    %204 = arith.addi %4, %c6_i32 : i32
    %c4_i32_94 = arith.constant 4 : i32
    %205 = arith.muli %204, %c4_i32_94 : i32
    %c0_i32_95 = arith.constant 0 : i32
    %206 = arith.addi %205, %c0_i32_95 : i32
    %207 = arith.index_cast %206 : i32 to index
    %208 = memref.load %arg1[%207] : memref<32xi32, #tpu.memory_space<smem>>
    %209 = arith.index_cast %208 : i32 to index
    %c0_96 = arith.constant 0 : index
    %210 = vector.load %arg2[%209, %c0_96] : memref<16x32xf32, #tpu.memory_space<vmem>>, vector<1x32xf32>
    %c4_i32_97 = arith.constant 4 : i32
    %211 = arith.muli %204, %c4_i32_97 : i32
    %c1_i32_98 = arith.constant 1 : i32
    %212 = arith.addi %211, %c1_i32_98 : i32
    %213 = arith.index_cast %212 : i32 to index
    %214 = memref.load %arg1[%213] : memref<32xi32, #tpu.memory_space<smem>>
    %215 = arith.index_cast %214 : i32 to index
    %c0_99 = arith.constant 0 : index
    %216 = vector.load %arg2[%215, %c0_99] : memref<16x32xf32, #tpu.memory_space<vmem>>, vector<1x32xf32>
    %c4_i32_100 = arith.constant 4 : i32
    %217 = arith.muli %204, %c4_i32_100 : i32
    %c2_i32_101 = arith.constant 2 : i32
    %218 = arith.addi %217, %c2_i32_101 : i32
    %219 = arith.index_cast %218 : i32 to index
    %220 = memref.load %arg1[%219] : memref<32xi32, #tpu.memory_space<smem>>
    %221 = arith.index_cast %220 : i32 to index
    %c0_102 = arith.constant 0 : index
    %222 = vector.load %arg2[%221, %c0_102] : memref<16x32xf32, #tpu.memory_space<vmem>>, vector<1x32xf32>
    %c4_i32_103 = arith.constant 4 : i32
    %223 = arith.muli %204, %c4_i32_103 : i32
    %c3_i32_104 = arith.constant 3 : i32
    %224 = arith.addi %223, %c3_i32_104 : i32
    %225 = arith.index_cast %224 : i32 to index
    %226 = memref.load %arg1[%225] : memref<32xi32, #tpu.memory_space<smem>>
    %227 = arith.index_cast %226 : i32 to index
    %c0_105 = arith.constant 0 : index
    %228 = vector.load %arg2[%227, %c0_105] : memref<16x32xf32, #tpu.memory_space<vmem>>, vector<1x32xf32>
    %229 = tpu.concatenate %210, %216, %222, %228 in 0 : vector<1x32xf32>, vector<1x32xf32>, vector<1x32xf32>, vector<1x32xf32> -> vector<4x32xf32>
    %cst_106 = arith.constant dense<0.000000e+00> : vector<4x32xf32>
    %230 = tpu.matmul %199, %3, %cst_106 {dimension_numbers = #tpu.dot_dimension_numbers<[1], [0], [0], [1], [0, 0, 1, 1], [], []>} : vector<4x32xf32>, vector<32x32xf32>, vector<4x32xf32> -> vector<4x32xf32>
    %231 = arith.addf %229, %230 : vector<4x32xf32>
    %232 = math.tanh %231 : vector<4x32xf32>
    %233 = arith.index_cast %c6_i32 : i32 to index
    %c0_107 = arith.constant 0 : index
    %c0_108 = arith.constant 0 : index
    %234 = vector.load %arg8[%233, %c0_107, %c0_108] : memref<8x4x32xf32, #tpu.memory_space<vmem>>, vector<1x4x32xf32>
    %235 = vector.shape_cast %234 : vector<1x4x32xf32> to vector<4x32xf32>
    %236 = vector.shape_cast %232 : vector<4x32xf32> to vector<1x4x32xf32>
    tpu.vector_store %arg8[%233, %c0_107, %c0_108], %236 {strides = array<i32>} : memref<8x4x32xf32, #tpu.memory_space<vmem>>, vector<1x4x32xf32>,
    %c7_i32 = arith.constant 7 : i32
    %237 = arith.addi %4, %c7_i32 : i32
    %c4_i32_109 = arith.constant 4 : i32
    %238 = arith.muli %237, %c4_i32_109 : i32
    %c0_i32_110 = arith.constant 0 : i32
    %239 = arith.addi %238, %c0_i32_110 : i32
    %240 = arith.index_cast %239 : i32 to index
    %241 = memref.load %arg1[%240] : memref<32xi32, #tpu.memory_space<smem>>
    %242 = arith.index_cast %241 : i32 to index
    %c0_111 = arith.constant 0 : index
    %243 = vector.load %arg2[%242, %c0_111] : memref<16x32xf32, #tpu.memory_space<vmem>>, vector<1x32xf32>
    %c4_i32_112 = arith.constant 4 : i32
    %244 = arith.muli %237, %c4_i32_112 : i32
    %c1_i32_113 = arith.constant 1 : i32
    %245 = arith.addi %244, %c1_i32_113 : i32
    %246 = arith.index_cast %245 : i32 to index
    %247 = memref.load %arg1[%246] : memref<32xi32, #tpu.memory_space<smem>>
    %248 = arith.index_cast %247 : i32 to index
    %c0_114 = arith.constant 0 : index
    %249 = vector.load %arg2[%248, %c0_114] : memref<16x32xf32, #tpu.memory_space<vmem>>, vector<1x32xf32>
    %c4_i32_115 = arith.constant 4 : i32
    %250 = arith.muli %237, %c4_i32_115 : i32
    %c2_i32_116 = arith.constant 2 : i32
    %251 = arith.addi %250, %c2_i32_116 : i32
    %252 = arith.index_cast %251 : i32 to index
    %253 = memref.load %arg1[%252] : memref<32xi32, #tpu.memory_space<smem>>
    %254 = arith.index_cast %253 : i32 to index
    %c0_117 = arith.constant 0 : index
    %255 = vector.load %arg2[%254, %c0_117] : memref<16x32xf32, #tpu.memory_space<vmem>>, vector<1x32xf32>
    %c4_i32_118 = arith.constant 4 : i32
    %256 = arith.muli %237, %c4_i32_118 : i32
    %c3_i32_119 = arith.constant 3 : i32
    %257 = arith.addi %256, %c3_i32_119 : i32
    %258 = arith.index_cast %257 : i32 to index
    %259 = memref.load %arg1[%258] : memref<32xi32, #tpu.memory_space<smem>>
    %260 = arith.index_cast %259 : i32 to index
    %c0_120 = arith.constant 0 : index
    %261 = vector.load %arg2[%260, %c0_120] : memref<16x32xf32, #tpu.memory_space<vmem>>, vector<1x32xf32>
    %262 = tpu.concatenate %243, %249, %255, %261 in 0 : vector<1x32xf32>, vector<1x32xf32>, vector<1x32xf32>, vector<1x32xf32> -> vector<4x32xf32>
    %cst_121 = arith.constant dense<0.000000e+00> : vector<4x32xf32>
    %263 = tpu.matmul %232, %3, %cst_121 {dimension_numbers = #tpu.dot_dimension_numbers<[1], [0], [0], [1], [0, 0, 1, 1], [], []>} : vector<4x32xf32>, vector<32x32xf32>, vector<4x32xf32> -> vector<4x32xf32>
    %264 = arith.addf %262, %263 : vector<4x32xf32>
    %265 = math.tanh %264 : vector<4x32xf32>
    %266 = arith.index_cast %c7_i32 : i32 to index
    %c0_122 = arith.constant 0 : index
    %c0_123 = arith.constant 0 : index
    %267 = vector.load %arg8[%266, %c0_122, %c0_123] : memref<8x4x32xf32, #tpu.memory_space<vmem>>, vector<1x4x32xf32>
    %268 = vector.shape_cast %267 : vector<1x4x32xf32> to vector<4x32xf32>
    %269 = vector.shape_cast %265 : vector<4x32xf32> to vector<1x4x32xf32>
    tpu.vector_store %arg8[%266, %c0_122, %c0_123], %269 {strides = array<i32>} : memref<8x4x32xf32, #tpu.memory_space<vmem>>, vector<1x4x32xf32>,
    %c8_i32_124 = arith.constant 8 : i32
    %c0_125 = arith.constant 0 : index
    %c0_126 = arith.constant 0 : index
    %270 = vector.load %arg7[%c0_125, %c0_126] : memref<4x32xf32, #tpu.memory_space<vmem>>, vector<4x32xf32>
    tpu.vector_store %arg7[%c0_125, %c0_126], %265 {strides = array<i32>} : memref<4x32xf32, #tpu.memory_space<vmem>>, vector<4x32xf32>,
    %c0_127 = arith.constant 0 : index
    %c0_128 = arith.constant 0 : index
    %c0_129 = arith.constant 0 : index
    %271 = vector.load %arg8[%c0_127, %c0_128, %c0_129] : memref<8x4x32xf32, #tpu.memory_space<vmem>>, vector<8x4x32xf32>
    %c0_130 = arith.constant 0 : index
    %c0_131 = arith.constant 0 : index
    %272 = vector.load %arg4[%c0_130, %c0_131] : memref<32x128xf32, #tpu.memory_space<vmem>>, vector<32x128xf32>
    %cst_132 = arith.constant dense<0.000000e+00> : vector<8x4x128xf32>
    %273 = tpu.matmul %271, %272, %cst_132 {dimension_numbers = #tpu.dot_dimension_numbers<[2], [0], [0, 1], [1], [0, 0, 0, 1, 1, 1], [], []>} : vector<8x4x32xf32>, vector<32x128xf32>, vector<8x4x128xf32> -> vector<8x4x128xf32>
    %c0_133 = arith.constant 0 : index
    %c0_134 = arith.constant 0 : index
    %274 = vector.load %arg5[%c0_133, %c0_134] : memref<1x128xf32, #tpu.memory_space<vmem>>, vector<1x128xf32>
    %275 = vector.shape_cast %274 : vector<1x128xf32> to vector<1x1x128xf32>
    %276 = vector.broadcast %275 : vector<1x1x128xf32> to vector<8x4x128xf32>
    %277 = arith.addf %273, %276 : vector<8x4x128xf32>
    %cst_135 = arith.constant dense<0xFF800000> : vector<8x4xf32>
    %278 = vector.multi_reduction <maximumf>, %277, %cst_135 [2] : vector<8x4x128xf32> to vector<8x4xf32>
    %279 = vector.shape_cast %278 : vector<8x4xf32> to vector<8x4x1xf32>
    %280 = vector.broadcast %279 : vector<8x4x1xf32> to vector<8x4x128xf32>
    %281 = arith.subf %277, %280 : vector<8x4x128xf32>
    %282 = math.exp %281 : vector<8x4x128xf32>
    %cst_136 = arith.constant dense<0.000000e+00> : vector<8x4xf32>
    %283 = vector.multi_reduction <add>, %282, %cst_136 [2] : vector<8x4x128xf32> to vector<8x4xf32>
    %284 = vector.shape_cast %283 : vector<8x4xf32> to vector<8x4x1xf32>
    %285 = math.log %284 : vector<8x4x1xf32>
    %286 = vector.broadcast %285 : vector<8x4x1xf32> to vector<8x4x128xf32>
    %287 = arith.subf %281, %286 : vector<8x4x128xf32>
    %c0_137 = arith.constant 0 : index
    %c0_138 = arith.constant 0 : index
    %c0_139 = arith.constant 0 : index
    %288 = vector.load %arg6[%c0_137, %c0_138, %c0_139] : memref<8x4x128xf32, #tpu.memory_space<vmem>>, vector<8x4x128xf32>
    tpu.vector_store %arg6[%c0_137, %c0_138, %c0_139], %287 {strides = array<i32>} : memref<8x4x128xf32, #tpu.memory_space<vmem>>, vector<8x4x128xf32>,
    return
  }
  func.func @transform_0(%arg0: i32, %arg1: memref<32xi32, #tpu.memory_space<smem>>) -> (i32, i32) {
    %c0_i32 = arith.constant 0 : i32
    %c0_i32_0 = arith.constant 0 : i32
    %c0_i32_1 = arith.constant 0 : i32
    return %c0_i32, %c0_i32_0 : i32, i32
  }
  func.func @transform_1(%arg0: i32, %arg1: memref<32xi32, #tpu.memory_space<smem>>) -> (i32, i32) {
    %c0_i32 = arith.constant 0 : i32
    %c0_i32_0 = arith.constant 0 : i32
    %c0_i32_1 = arith.constant 0 : i32
    return %c0_i32, %c0_i32_0 : i32, i32
  }
  func.func @transform_2(%arg0: i32, %arg1: memref<32xi32, #tpu.memory_space<smem>>) -> (i32, i32) {
    %c0_i32 = arith.constant 0 : i32
    %c0_i32_0 = arith.constant 0 : i32
    %c0_i32_1 = arith.constant 0 : i32
    return %c0_i32, %c0_i32_0 : i32, i32
  }
  func.func @transform_3(%arg0: i32, %arg1: memref<32xi32, #tpu.memory_space<smem>>) -> (i32, i32) {
    %c0_i32 = arith.constant 0 : i32
    %c0_i32_0 = arith.constant 0 : i32
    %c0_i32_1 = arith.constant 0 : i32
    return %c0_i32, %c0_i32_0 : i32, i32
  }
  func.func @transform_4(%arg0: i32, %arg1: memref<32xi32, #tpu.memory_space<smem>>) -> (i32, i32, i32) {
    %c0_i32 = arith.constant 0 : i32
    %c0_i32_0 = arith.constant 0 : i32
    %c0_i32_1 = arith.constant 0 : i32
    return %arg0, %c0_i32, %c0_i32_0 : i32, i32, i32
  }
}

</mosaic_0001>

<llo_original>
// kernel: tpu_custom_call.1
$region0: #{tpu_custom_call.1}
  #allocation0 [shape = 'u32[]', space=smem, size = 0x4, offset = 0x4, fixed_abs, tag = 'smem constant byte address 0x4 - core index']
  #allocation1 [shape = 'u32[144,128]{1,0:T(1,128)}', space=vmem, size = 0x12000, scoped, tag = 'internal scratch']
  #allocation2 [shape = 'f32[4,32]{1,0:T(4,128)}', space=vmem, size = 0x800, scoped, tag = 'scratch operand']
  #allocation3 [shape = 'f32[8,4,32]{2,1,0:T(4,128)}', space=vmem, size = 0x4000, scoped, tag = 'scratch operand']
  #allocation4 [shape = 's32[1]{0}', space=sflag, size = 0x4, scoped, tag = 'scoped memory for tpu_custom_call.1']
  #allocation5 [shape = 'u8[512]{0}', space=smem, size = 0x200, scoped, tag = 'prefetched SMEM operand 0']
  %s0 = inlined_call_operand.hbm [shape: s32[32], index: 0, kind: input, shape index: {}]
  %s1 = inlined_call_operand.hbm [shape: f32[16,32], index: 1, kind: input, shape index: {}]
  %s2 = inlined_call_operand.hbm [shape: f32[32,32], index: 2, kind: input, shape index: {}]
  %s3 = inlined_call_operand.hbm [shape: f32[32,128], index: 3, kind: input, shape index: {}]
  %s4 = inlined_call_operand.vmem [shape: f32[1,128], index: 4, kind: input, shape index: {}]
  %s5 = inlined_call_operand.hbm [shape: f32[8,4,128], index: 5, kind: output, shape index: {}]
  %s6 = sld [smem:[#allocation0]]
  $region42: #{tpu_custom_call.1} parent=0
    _
  %s8 = ssub.s32 1, %s6
  %s9 = scalar_select 0, %s8, %s6
  %11 = dma.hbm_to_smem %s0, 16, [#allocation5], [#allocation4]
  %12 = dma.done [#allocation4], 16
  %13 = sfence
  $region1: #{tpu_custom_call.1} parent=0
    #allocation6 [shape = 'u8[8192]{0}', space=vmem, size = 0x2000, scoped, tag = 'input window, operand 1, single buffered']
    #allocation7 [shape = 's32[1]{0}', space=sflag, size = 0x4, scoped, tag = 'scoped memory for tpu_custom_call.1']
    #allocation8 [shape = 's32[1]{0}', space=sflag, size = 0x4, scoped, tag = 'scoped memory for tpu_custom_call.1']
    #allocation9 [shape = 'u8[16384]{0}', space=vmem, size = 0x4000, scoped, tag = 'input window, operand 2, single buffered']
    #allocation10 [shape = 's32[1]{0}', space=sflag, size = 0x4, scoped, tag = 'scoped memory for tpu_custom_call.1']
    #allocation11 [shape = 'u8[16384]{0}', space=vmem, size = 0x4000, scoped, tag = 'input window, operand 3, single buffered']
    #allocation12 [shape = 'u8[16384]{0}', space=vmem, size = 0x4000, scoped, tag = 'output window, operand 0, single buffered']
    %14 = vsyncpa [#allocation7], 0
    %15 = vsyncpa [#allocation10], 0
    %16 = vsyncpa [#allocation8], 0
    // Predicated region
    $region2: #{tpu_custom_call.1} parent=1 // pred_check
      _
    $region3: #{tpu_custom_call.1} parent=1 // pred_check_branch
      %18 = sbr.rel (0) target = $region5
    $region4: #{tpu_custom_call.1} parent=1 // pred_region
      %s20 = ssub.s32 256, 256
      %21 = vsyncadd [#allocation7], %s20
      %s22 = sshll.u32 [#allocation6], 4
      %s23 = int_to_ptr.vmem [resolvable:$true] %s22
      %28 = dma.hbm_to_vmem [thread:$0]  %s1, 256, %s23, [#allocation7], 128, 128, 8
    $region5: #{tpu_custom_call.1} parent=1 // pred_fallthru
      _
    // Predicated region
    $region6: #{tpu_custom_call.1} parent=1 // pred_check
      _
    $region7: #{tpu_custom_call.1} parent=1 // pred_check_branch
      %30 = sbr.rel (0) target = $region9
    $region8: #{tpu_custom_call.1} parent=1 // pred_region
      %s32 = ssub.s32 512, 512
      %33 = vsyncadd [#allocation10], %s32
      %s34 = sshll.u32 [#allocation9], 4
      %s35 = int_to_ptr.vmem [resolvable:$true] %s34
      %40 = dma.hbm_to_vmem [thread:$0]  %s2, 512, %s35, [#allocation10], 128, 128, 8
    $region9: #{tpu_custom_call.1} parent=1 // pred_fallthru
      _
    // Predicated region
    $region10: #{tpu_custom_call.1} parent=1 // pred_check
      _
    $region11: #{tpu_custom_call.1} parent=1 // pred_check_branch
      %42 = sbr.rel (0) target = $region13
    $region12: #{tpu_custom_call.1} parent=1 // pred_region
      %s44 = ssub.s32 512, 512
      %45 = vsyncadd [#allocation10], %s44
      %s46 = sshll.u32 [#allocation11], 4
      %s47 = int_to_ptr.vmem [resolvable:$true] %s46
      %52 = dma.hbm_to_vmem [thread:$0]  %s3, 512, %s47, [#allocation10], 128, 128, 8
    $region13: #{tpu_custom_call.1} parent=1 // pred_fallthru
      _
    // Predicated region
    $region14: #{tpu_custom_call.1} parent=1 // pred_check
      _
    $region15: #{tpu_custom_call.1} parent=1 // pred_check_branch
      %54 = sbr.rel (0) target = $region17
    $region16: #{tpu_custom_call.1} parent=1 // pred_region
      _
    $region17: #{tpu_custom_call.1} parent=1 // pred_fallthru
      _
    // Predicated region
    $region18: #{tpu_custom_call.1} parent=1 // pred_check
      _
    $region19: #{tpu_custom_call.1} parent=1 // pred_check_branch
      %56 = sbr.rel (0) target = $region21
    $region20: #{tpu_custom_call.1} parent=1 // pred_region
      %57 = dma.done [#allocation7], 256
    $region21: #{tpu_custom_call.1} parent=1 // pred_fallthru
      _
    // Predicated region
    $region22: #{tpu_custom_call.1} parent=1 // pred_check
      _
    $region23: #{tpu_custom_call.1} parent=1 // pred_check_branch
      %59 = sbr.rel (0) target = $region25
    $region24: #{tpu_custom_call.1} parent=1 // pred_region
      %60 = dma.done [#allocation10], 512
    $region25: #{tpu_custom_call.1} parent=1 // pred_fallthru
      _
    // Predicated region
    $region26: #{tpu_custom_call.1} parent=1 // pred_check
      _
    $region27: #{tpu_custom_call.1} parent=1 // pred_check_branch
      %62 = sbr.rel (0) target = $region29
    $region28: #{tpu_custom_call.1} parent=1 // pred_region
      %63 = dma.done [#allocation10], 512
    $region29: #{tpu_custom_call.1} parent=1 // pred_fallthru
      _
    %p64 = scmp.eq.s32.totalorder 0, 0
    // Predicated region
    $region30: #{tpu_custom_call.1} parent=1 // pred_check
      %p65 = pneg %p64
    $region31: #{tpu_custom_call.1} parent=1 // pred_check_branch
      %67 = sbr.rel (%p65) target = $region33
    $region32: #{tpu_custom_call.1} parent=1 // pred_region
      %vm68 = vcmask 257024
      %69 = vst.msk [vmem:[#allocation2] sm:$0xf] %vm68, 0.0
    $region33: #{tpu_custom_call.1} parent=1 // pred_fallthru
      _
    %v70 = vld [vmem:[#allocation9] sm:$0xff]
    %v71 = vld [vmem:[#allocation9 + $0x8] sm:$0xff]
    %v72 = vld [vmem:[#allocation9 + $0x10] sm:$0xff]
    %v73 = vld [vmem:[#allocation9 + $0x18] sm:$0xff]
    %s74 = smul.u32 0, 8
    %v75 = vld [vmem:[#allocation2] sm:$0xf]
    %s76 = smul.u32 0, 32
    %s77 = sld [smem:[#allocation5 + %s76]]
    %s78 = scalar_lea.vmem [#allocation6], %s77
    %v79 = vld [vmem:[%s78] sm:$0x1]
    %s80 = sadd.s32 %s76, 1
    %s81 = sld [smem:[#allocation5 + %s80]]
    %s82 = scalar_lea.vmem [#allocation6], %s81
    %v83 = vld [vmem:[%s82] sm:$0x1]
    %s84 = sadd.s32 %s76, 2
    %s85 = sld [smem:[#allocation5 + %s84]]
    %s86 = scalar_lea.vmem [#allocation6], %s85
    %v87 = vld [vmem:[%s86] sm:$0x1]
    %s88 = sadd.s32 %s76, 3
    %s89 = sld [smem:[#allocation5 + %s88]]
    %s90 = scalar_lea.vmem [#allocation6], %s89
    %v91 = vld [vmem:[%s90] sm:$0x1]
    %v93 = vrot.slane %v83, 7
    %v96 = vrot.slane %v87, 6
    %v99 = vrot.slane %v91, 5
    %vm101 = vcmask 1040384
    %v102 = vsel %vm101, %v79, %v93
    %vm103 = vcmask 1041408
    %v104 = vsel %vm103, %v102, %v96
    %vm105 = vcmask 1042432
    %v106 = vsel %vm105, %v104, %v99
    %vm107 = vcmask 261120
    %v109 = vsel %vm107, %v75, 0
    %111 = vmatprep.subr.mxu0 0.0
    %112 = vmatpush1.msra.mxu0 %v70
    %113 = vmatprep.subr.mxu0 0.0
    %114 = vmatpush1.msra.mxu0 %v71
    %115 = vmatprep.subr.mxu0 0.0
    %116 = vmatpush1.msra.mxu0 %v72
    %117 = vmatprep.subr.mxu0 0.0
    %118 = vmatpush1.msra.mxu0 %v73
    %119 = vmatprep.subr.mxu0 0.0
    %120 = vmatpush1.msra.mxu0 0.0
    %121 = vmatprep.subr.mxu0 0.0
    %122 = vmatpush1.msra.mxu0 0.0
    %123 = vmatprep.subr.mxu0 0.0
    %124 = vmatpush1.msra.mxu0 0.0
    %125 = vmatprep.subr.mxu0 0.0
    %126 = vmatpush1.msra.mxu0 0.0
    %127 = vmatprep.subr.mxu0 0.0
    %128 = vmatpush1.msra.mxu0 0.0
    %129 = vmatprep.subr.mxu0 0.0
    %130 = vmatpush1.msra.mxu0 0.0
    %131 = vmatprep.subr.mxu0 0.0
    %132 = vmatpush1.msra.mxu0 0.0
    %133 = vmatprep.subr.mxu0 0.0
    %134 = vmatpush1.msra.mxu0 0.0
    %135 = vmatprep.subr.mxu0 0.0
    %136 = vmatpush1.msra.mxu0 0.0
    %137 = vmatprep.subr.mxu0 0.0
    %138 = vmatpush1.msra.mxu0 0.0
    %139 = vmatprep.subr.mxu0 0.0
    %140 = vmatpush1.msra.mxu0 0.0
    %141 = vmatprep.subr.mxu0 0.0
    %142 = vmatpush1.msra.mxu0 0.0
    %143 = vmatprep.subr.mxu0 0.0
    %144 = vmatpush1.msra.mxu0 0.0
    %145 = vmatprep.subr.mxu0 0.0
    %146 = vmatpush1.msra.mxu0 0.0
    %147 = vmatprep.subr.mxu0 0.0
    %148 = vmatpush1.msra.mxu0 0.0
    %149 = vmatprep.subr.mxu0 0.0
    %150 = vmatpush1.msra.mxu0 0.0
    %151 = vmatprep.subr.mxu0 0.0
    %152 = vmatpush1.msra.mxu0 0.0
    %153 = vmatprep.subr.mxu0 0.0
    %154 = vmatpush1.msra.mxu0 0.0
    %155 = vmatprep.subr.mxu0 0.0
    %156 = vmatpush1.msra.mxu0 0.0
    %157 = vmatprep.subr.mxu0 0.0
    %158 = vmatpush1.msra.mxu0 0.0
    %159 = vmatprep.subr.mxu0 0.0
    %160 = vmatpush1.msra.mxu0 0.0
    %161 = vmatprep.subr.mxu0 0.0
    %162 = vmatpush1.msra.mxu0 0.0
    %163 = vmatprep.subr.mxu0 0.0
    %164 = vmatpush1.msra.mxu0 0.0
    %165 = vmatprep.subr.mxu0 0.0
    %166 = vmatpush1.msra.mxu0 0.0
    %167 = vmatprep.subr.mxu0 0.0
    %168 = vmatpush1.msra.mxu0 0.0
    %169 = vmatprep.subr.mxu0 0.0
    %170 = vmatpush1.msra.mxu0 0.0
    %171 = vmatprep.subr.mxu0 0.0
    %172 = vmatpush1.msra.mxu0 0.0
    %173 = vmatprep.subr.mxu0 0.0
    %174 = vmatpush1.msra.mxu0 0.0
    %175 = vmatprep.mubr.f32.mxu0 0.0
    %176 = vmatmul.mubr.f32.gmra.mrb[0].mxu0 %v109
    %v177 = vpop.f32.mrb[0].mxu0
    %v178 = vadd.f32 0.0, %v177
    %v179 = vpop.f32.mrb[0].mxu0
    %180 = vdwg.mxu0
    %v181 = vadd.f32 %v106, %v178
    %v182 = vtanh.pop %v181
    %vm183 = vcmask 257024
    %184 = vst.msk [vmem:[#allocation3] sm:$0xf] %vm183, %v182
    %s185 = sadd.s32 %s74, 1
    %s186 = smul.u32 %s185, 4
    %s187 = sld [smem:[#allocation5 + %s186]]
    %s188 = scalar_lea.vmem [#allocation6], %s187
    %v189 = vld [vmem:[%s188] sm:$0x1]
    %s190 = sadd.s32 %s186, 1
    %s191 = sld [smem:[#allocation5 + %s190]]
    %s192 = scalar_lea.vmem [#allocation6], %s191
    %v193 = vld [vmem:[%s192] sm:$0x1]
    %s194 = sadd.s32 %s186, 2
    %s195 = sld [smem:[#allocation5 + %s194]]
    %s196 = scalar_lea.vmem [#allocation6], %s195
    %v197 = vld [vmem:[%s196] sm:$0x1]
    %s198 = sadd.s32 %s186, 3
    %s199 = sld [smem:[#allocation5 + %s198]]
    %s200 = scalar_lea.vmem [#allocation6], %s199
    %v201 = vld [vmem:[%s200] sm:$0x1]
    %v203 = vrot.slane %v193, 7
    %v206 = vrot.slane %v197, 6
    %v209 = vrot.slane %v201, 5
    %v211 = vsel %vm101, %v189, %v203
    %v212 = vsel %vm103, %v211, %v206
    %v213 = vsel %vm105, %v212, %v209
    %v215 = vsel %vm107, %v182, 0
    %217 = vmatprep.subr.mxu0 0.0
    %218 = vmatpush1.msra.mxu0 %v70
    %219 = vmatprep.subr.mxu0 0.0
    %220 = vmatpush1.msra.mxu0 %v71
    %221 = vmatprep.subr.mxu0 0.0
    %222 = vmatpush1.msra.mxu0 %v72
    %223 = vmatprep.subr.mxu0 0.0
    %224 = vmatpush1.msra.mxu0 %v73
    %225 = vmatprep.subr.mxu0 0.0
    %226 = vmatpush1.msra.mxu0 0.0
    %227 = vmatprep.subr.mxu0 0.0
    %228 = vmatpush1.msra.mxu0 0.0
    %229 = vmatprep.subr.mxu0 0.0
    %230 = vmatpush1.msra.mxu0 0.0
    %231 = vmatprep.subr.mxu0 0.0
    %232 = vmatpush1.msra.mxu0 0.0
    %233 = vmatprep.subr.mxu0 0.0
    %234 = vmatpush1.msra.mxu0 0.0
    %235 = vmatprep.subr.mxu0 0.0
    %236 = vmatpush1.msra.mxu0 0.0
    %237 = vmatprep.subr.mxu0 0.0
    %238 = vmatpush1.msra.mxu0 0.0
    %239 = vmatprep.subr.mxu0 0.0
    %240 = vmatpush1.msra.mxu0 0.0
    %241 = vmatprep.subr.mxu0 0.0
    %242 = vmatpush1.msra.mxu0 0.0
    %243 = vmatprep.subr.mxu0 0.0
    %244 = vmatpush1.msra.mxu0 0.0
    %245 = vmatprep.subr.mxu0 0.0
    %246 = vmatpush1.msra.mxu0 0.0
    %247 = vmatprep.subr.mxu0 0.0
    %248 = vmatpush1.msra.mxu0 0.0
    %249 = vmatprep.subr.mxu0 0.0
    %250 = vmatpush1.msra.mxu0 0.0
    %251 = vmatprep.subr.mxu0 0.0
    %252 = vmatpush1.msra.mxu0 0.0
    %253 = vmatprep.subr.mxu0 0.0
    %254 = vmatpush1.msra.mxu0 0.0
    %255 = vmatprep.subr.mxu0 0.0
    %256 = vmatpush1.msra.mxu0 0.0
    %257 = vmatprep.subr.mxu0 0.0
    %258 = vmatpush1.msra.mxu0 0.0
    %259 = vmatprep.subr.mxu0 0.0
    %260 = vmatpush1.msra.mxu0 0.0
    %261 = vmatprep.subr.mxu0 0.0
    %262 = vmatpush1.msra.mxu0 0.0
    %263 = vmatprep.subr.mxu0 0.0
    %264 = vmatpush1.msra.mxu0 0.0
    %265 = vmatprep.subr.mxu0 0.0
    %266 = vmatpush1.msra.mxu0 0.0
    %267 = vmatprep.subr.mxu0 0.0
    %268 = vmatpush1.msra.mxu0 0.0
    %269 = vmatprep.subr.mxu0 0.0
    %270 = vmatpush1.msra.mxu0 0.0
    %271 = vmatprep.subr.mxu0 0.0
    %272 = vmatpush1.msra.mxu0 0.0
    %273 = vmatprep.subr.mxu0 0.0
    %274 = vmatpush1.msra.mxu0 0.0
    %275 = vmatprep.subr.mxu0 0.0
    %276 = vmatpush1.msra.mxu0 0.0
    %277 = vmatprep.subr.mxu0 0.0
    %278 = vmatpush1.msra.mxu0 0.0
    %279 = vmatprep.subr.mxu0 0.0
    %280 = vmatpush1.msra.mxu0 0.0
    %281 = vmatprep.mubr.f32.mxu0 0.0
    %282 = vmatmul.mubr.f32.gmra.mrb[0].mxu0 %v215
    %v283 = vpop.f32.mrb[0].mxu0
    %v284 = vadd.f32 0.0, %v283
    %v285 = vpop.f32.mrb[0].mxu0
    %286 = vdwg.mxu0
    %v287 = vadd.f32 %v213, %v284
    %v288 = vtanh.pop %v287
    %s289 = scalar_lea.vmem [#allocation3], 4
    %290 = vst.msk [vmem:[%s289] sm:$0xf] %vm183, %v288
    %s291 = sadd.s32 %s74, 2
    %s292 = smul.u32 %s291, 4
    %s293 = sld [smem:[#allocation5 + %s292]]
    %s294 = scalar_lea.vmem [#allocation6], %s293
    %v295 = vld [vmem:[%s294] sm:$0x1]
    %s296 = sadd.s32 %s292, 1
    %s297 = sld [smem:[#allocation5 + %s296]]
    %s298 = scalar_lea.vmem [#allocation6], %s297
    %v299 = vld [vmem:[%s298] sm:$0x1]
    %s300 = sadd.s32 %s292, 2
    %s301 = sld [smem:[#allocation5 + %s300]]
    %s302 = scalar_lea.vmem [#allocation6], %s301
    %v303 = vld [vmem:[%s302] sm:$0x1]
    %s304 = sadd.s32 %s292, 3
    %s305 = sld [smem:[#allocation5 + %s304]]
    %s306 = scalar_lea.vmem [#allocation6], %s305
    %v307 = vld [vmem:[%s306] sm:$0x1]
    %v309 = vrot.slane %v299, 7
    %v312 = vrot.slane %v303, 6
    %v315 = vrot.slane %v307, 5
    %v317 = vsel %vm101, %v295, %v309
    %v318 = vsel %vm103, %v317, %v312
    %v319 = vsel %vm105, %v318, %v315
    %v321 = vsel %vm107, %v288, 0
    %323 = vmatprep.subr.mxu0 0.0
    %324 = vmatpush1.msra.mxu0 %v70
    %325 = vmatprep.subr.mxu0 0.0
    %326 = vmatpush1.msra.mxu0 %v71
    %327 = vmatprep.subr.mxu0 0.0
    %328 = vmatpush1.msra.mxu0 %v72
    %329 = vmatprep.subr.mxu0 0.0
    %330 = vmatpush1.msra.mxu0 %v73
    %331 = vmatprep.subr.mxu0 0.0
    %332 = vmatpush1.msra.mxu0 0.0
    %333 = vmatprep.subr.mxu0 0.0
    %334 = vmatpush1.msra.mxu0 0.0
    %335 = vmatprep.subr.mxu0 0.0
    %336 = vmatpush1.msra.mxu0 0.0
    %337 = vmatprep.subr.mxu0 0.0
    %338 = vmatpush1.msra.mxu0 0.0
    %339 = vmatprep.subr.mxu0 0.0
    %340 = vmatpush1.msra.mxu0 0.0
    %341 = vmatprep.subr.mxu0 0.0
    %342 = vmatpush1.msra.mxu0 0.0
    %343 = vmatprep.subr.mxu0 0.0
    %344 = vmatpush1.msra.mxu0 0.0
    %345 = vmatprep.subr.mxu0 0.0
    %346 = vmatpush1.msra.mxu0 0.0
    %347 = vmatprep.subr.mxu0 0.0
    %348 = vmatpush1.msra.mxu0 0.0
    %349 = vmatprep.subr.mxu0 0.0
    %350 = vmatpush1.msra.mxu0 0.0
    %351 = vmatprep.subr.mxu0 0.0
    %352 = vmatpush1.msra.mxu0 0.0
    %353 = vmatprep.subr.mxu0 0.0
    %354 = vmatpush1.msra.mxu0 0.0
    %355 = vmatprep.subr.mxu0 0.0
    %356 = vmatpush1.msra.mxu0 0.0
    %357 = vmatprep.subr.mxu0 0.0
    %358 = vmatpush1.msra.mxu0 0.0
    %359 = vmatprep.subr.mxu0 0.0
    %360 = vmatpush1.msra.mxu0 0.0
    %361 = vmatprep.subr.mxu0 0.0
    %362 = vmatpush1.msra.mxu0 0.0
    %363 = vmatprep.subr.mxu0 0.0
    %364 = vmatpush1.msra.mxu0 0.0
    %365 = vmatprep.subr.mxu0 0.0
    %366 = vmatpush1.msra.mxu0 0.0
    %367 = vmatprep.subr.mxu0 0.0
    %368 = vmatpush1.msra.mxu0 0.0
    %369 = vmatprep.subr.mxu0 0.0
    %370 = vmatpush1.msra.mxu0 0.0
    %371 = vmatprep.subr.mxu0 0.0
    %372 = vmatpush1.msra.mxu0 0.0
    %373 = vmatprep.subr.mxu0 0.0
    %374 = vmatpush1.msra.mxu0 0.0
    %375 = vmatprep.subr.mxu0 0.0
    %376 = vmatpush1.msra.mxu0 0.0
    %377 = vmatprep.subr.mxu0 0.0
    %378 = vmatpush1.msra.mxu0 0.0
    %379 = vmatprep.subr.mxu0 0.0
    %380 = vmatpush1.msra.mxu0 0.0
    %381 = vmatprep.subr.mxu0 0.0
    %382 = vmatpush1.msra.mxu0 0.0
    %383 = vmatprep.subr.mxu0 0.0
    %384 = vmatpush1.msra.mxu0 0.0
    %385 = vmatprep.subr.mxu0 0.0
    %386 = vmatpush1.msra.mxu0 0.0
    %387 = vmatprep.mubr.f32.mxu0 0.0
    %388 = vmatmul.mubr.f32.gmra.mrb[0].mxu0 %v321
    %v389 = vpop.f32.mrb[0].mxu0
    %v390 = vadd.f32 0.0, %v389
    %v391 = vpop.f32.mrb[0].mxu0
    %392 = vdwg.mxu0
    %v393 = vadd.f32 %v319, %v390
    %v394 = vtanh.pop %v393
    %s395 = scalar_lea.vmem [#allocation3], 8
    %396 = vst.msk [vmem:[%s395] sm:$0xf] %vm183, %v394
    %s397 = sadd.s32 %s74, 3
    %s398 = smul.u32 %s397, 4
    %s399 = sld [smem:[#allocation5 + %s398]]
    %s400 = scalar_lea.vmem [#allocation6], %s399
    %v401 = vld [vmem:[%s400] sm:$0x1]
    %s402 = sadd.s32 %s398, 1
    %s403 = sld [smem:[#allocation5 + %s402]]
    %s404 = scalar_lea.vmem [#allocation6], %s403
    %v405 = vld [vmem:[%s404] sm:$0x1]
    %s406 = sadd.s32 %s398, 2
    %s407 = sld [smem:[#allocation5 + %s406]]
    %s408 = scalar_lea.vmem [#allocation6], %s407
    %v409 = vld [vmem:[%s408] sm:$0x1]
    %s410 = sadd.s32 %s398, 3
    %s411 = sld [smem:[#allocation5 + %s410]]
    %s412 = scalar_lea.vmem [#allocation6], %s411
    %v413 = vld [vmem:[%s412] sm:$0x1]
    %v415 = vrot.slane %v405, 7
    %v418 = vrot.slane %v409, 6
    %v421 = vrot.slane %v413, 5
    %v423 = vsel %vm101, %v401, %v415
    %v424 = vsel %vm103, %v423, %v418
    %v425 = vsel %vm105, %v424, %v421
    %v427 = vsel %vm107, %v394, 0
    %429 = vmatprep.subr.mxu0 0.0
    %430 = vmatpush1.msra.mxu0 %v70
    %431 = vmatprep.subr.mxu0 0.0
    %432 = vmatpush1.msra.mxu0 %v71
    %433 = vmatprep.subr.mxu0 0.0
    %434 = vmatpush1.msra.mxu0 %v72
    %435 = vmatprep.subr.mxu0 0.0
    %436 = vmatpush1.msra.mxu0 %v73
    %437 = vmatprep.subr.mxu0 0.0
    %438 = vmatpush1.msra.mxu0 0.0
    %439 = vmatprep.subr.mxu0 0.0
    %440 = vmatpush1.msra.mxu0 0.0
    %441 = vmatprep.subr.mxu0 0.0
    %442 = vmatpush1.msra.mxu0 0.0
    %443 = vmatprep.subr.mxu0 0.0
    %444 = vmatpush1.msra.mxu0 0.0
    %445 = vmatprep.subr.mxu0 0.0
    %446 = vmatpush1.msra.mxu0 0.0
    %447 = vmatprep.subr.mxu0 0.0
    %448 = vmatpush1.msra.mxu0 0.0
    %449 = vmatprep.subr.mxu0 0.0
    %450 = vmatpush1.msra.mxu0 0.0
    %451 = vmatprep.subr.mxu0 0.0
    %452 = vmatpush1.msra.mxu0 0.0
    %453 = vmatprep.subr.mxu0 0.0
    %454 = vmatpush1.msra.mxu0 0.0
    %455 = vmatprep.subr.mxu0 0.0
    %456 = vmatpush1.msra.mxu0 0.0
    %457 = vmatprep.subr.mxu0 0.0
    %458 = vmatpush1.msra.mxu0 0.0
    %459 = vmatprep.subr.mxu0 0.0
    %460 = vmatpush1.msra.mxu0 0.0
    %461 = vmatprep.subr.mxu0 0.0
    %462 = vmatpush1.msra.mxu0 0.0
    %463 = vmatprep.subr.mxu0 0.0
    %464 = vmatpush1.msra.mxu0 0.0
    %465 = vmatprep.subr.mxu0 0.0
    %466 = vmatpush1.msra.mxu0 0.0
    %467 = vmatprep.subr.mxu0 0.0
    %468 = vmatpush1.msra.mxu0 0.0
    %469 = vmatprep.subr.mxu0 0.0
    %470 = vmatpush1.msra.mxu0 0.0
    %471 = vmatprep.subr.mxu0 0.0
    %472 = vmatpush1.msra.mxu0 0.0
    %473 = vmatprep.subr.mxu0 0.0
    %474 = vmatpush1.msra.mxu0 0.0
    %475 = vmatprep.subr.mxu0 0.0
    %476 = vmatpush1.msra.mxu0 0.0
    %477 = vmatprep.subr.mxu0 0.0
    %478 = vmatpush1.msra.mxu0 0.0
    %479 = vmatprep.subr.mxu0 0.0
    %480 = vmatpush1.msra.mxu0 0.0
    %481 = vmatprep.subr.mxu0 0.0
    %482 = vmatpush1.msra.mxu0 0.0
    %483 = vmatprep.subr.mxu0 0.0
    %484 = vmatpush1.msra.mxu0 0.0
    %485 = vmatprep.subr.mxu0 0.0
    %486 = vmatpush1.msra.mxu0 0.0
    %487 = vmatprep.subr.mxu0 0.0
    %488 = vmatpush1.msra.mxu0 0.0
    %489 = vmatprep.subr.mxu0 0.0
    %490 = vmatpush1.msra.mxu0 0.0
    %491 = vmatprep.subr.mxu0 0.0
    %492 = vmatpush1.msra.mxu0 0.0
    %493 = vmatprep.mubr.f32.mxu0 0.0
    %494 = vmatmul.mubr.f32.gmra.mrb[0].mxu0 %v427
    %v495 = vpop.f32.mrb[0].mxu0
    %v496 = vadd.f32 0.0, %v495
    %v497 = vpop.f32.mrb[0].mxu0
    %498 = vdwg.mxu0
    %v499 = vadd.f32 %v425, %v496
    %v500 = vtanh.pop %v499
    %s501 = scalar_lea.vmem [#allocation3], 12
    %502 = vst.msk [vmem:[%s501] sm:$0xf] %vm183, %v500
    %s503 = sadd.s32 %s74, 4
    %s504 = smul.u32 %s503, 4
    %s505 = sld [smem:[#allocation5 + %s504]]
    %s506 = scalar_lea.vmem [#allocation6], %s505
    %v507 = vld [vmem:[%s506] sm:$0x1]
    %s508 = sadd.s32 %s504, 1
    %s509 = sld [smem:[#allocation5 + %s508]]
    %s510 = scalar_lea.vmem [#allocation6], %s509
    %v511 = vld [vmem:[%s510] sm:$0x1]
    %s512 = sadd.s32 %s504, 2
    %s513 = sld [smem:[#allocation5 + %s512]]
    %s514 = scalar_lea.vmem [#allocation6], %s513
    %v515 = vld [vmem:[%s514] sm:$0x1]
    %s516 = sadd.s32 %s504, 3
    %s517 = sld [smem:[#allocation5 + %s516]]
    %s518 = scalar_lea.vmem [#allocation6], %s517
    %v519 = vld [vmem:[%s518] sm:$0x1]
    %v521 = vrot.slane %v511, 7
    %v524 = vrot.slane %v515, 6
    %v527 = vrot.slane %v519, 5
    %v529 = vsel %vm101, %v507, %v521
    %v530 = vsel %vm103, %v529, %v524
    %v531 = vsel %vm105, %v530, %v527
    %v533 = vsel %vm107, %v500, 0
    %535 = vmatprep.subr.mxu0 0.0
    %536 = vmatpush1.msra.mxu0 %v70
    %537 = vmatprep.subr.mxu0 0.0
    %538 = vmatpush1.msra.mxu0 %v71
    %539 = vmatprep.subr.mxu0 0.0
    %540 = vmatpush1.msra.mxu0 %v72
    %541 = vmatprep.subr.mxu0 0.0
    %542 = vmatpush1.msra.mxu0 %v73
    %543 = vmatprep.subr.mxu0 0.0
    %544 = vmatpush1.msra.mxu0 0.0
    %545 = vmatprep.subr.mxu0 0.0
    %546 = vmatpush1.msra.mxu0 0.0
    %547 = vmatprep.subr.mxu0 0.0
    %548 = vmatpush1.msra.mxu0 0.0
    %549 = vmatprep.subr.mxu0 0.0
    %550 = vmatpush1.msra.mxu0 0.0
    %551 = vmatprep.subr.mxu0 0.0
    %552 = vmatpush1.msra.mxu0 0.0
    %553 = vmatprep.subr.mxu0 0.0
    %554 = vmatpush1.msra.mxu0 0.0
    %555 = vmatprep.subr.mxu0 0.0
    %556 = vmatpush1.msra.mxu0 0.0
    %557 = vmatprep.subr.mxu0 0.0
    %558 = vmatpush1.msra.mxu0 0.0
    %559 = vmatprep.subr.mxu0 0.0
    %560 = vmatpush1.msra.mxu0 0.0
    %561 = vmatprep.subr.mxu0 0.0
    %562 = vmatpush1.msra.mxu0 0.0
    %563 = vmatprep.subr.mxu0 0.0
    %564 = vmatpush1.msra.mxu0 0.0
    %565 = vmatprep.subr.mxu0 0.0
    %566 = vmatpush1.msra.mxu0 0.0
    %567 = vmatprep.subr.mxu0 0.0
    %568 = vmatpush1.msra.mxu0 0.0
    %569 = vmatprep.subr.mxu0 0.0
    %570 = vmatpush1.msra.mxu0 0.0
    %571 = vmatprep.subr.mxu0 0.0
    %572 = vmatpush1.msra.mxu0 0.0
    %573 = vmatprep.subr.mxu0 0.0
    %574 = vmatpush1.msra.mxu0 0.0
    %575 = vmatprep.subr.mxu0 0.0
    %576 = vmatpush1.msra.mxu0 0.0
    %577 = vmatprep.subr.mxu0 0.0
    %578 = vmatpush1.msra.mxu0 0.0
    %579 = vmatprep.subr.mxu0 0.0
    %580 = vmatpush1.msra.mxu0 0.0
    %581 = vmatprep.subr.mxu0 0.0
    %582 = vmatpush1.msra.mxu0 0.0
    %583 = vmatprep.subr.mxu0 0.0
    %584 = vmatpush1.msra.mxu0 0.0
    %585 = vmatprep.subr.mxu0 0.0
    %586 = vmatpush1.msra.mxu0 0.0
    %587 = vmatprep.subr.mxu0 0.0
    %588 = vmatpush1.msra.mxu0 0.0
    %589 = vmatprep.subr.mxu0 0.0
    %590 = vmatpush1.msra.mxu0 0.0
    %591 = vmatprep.subr.mxu0 0.0
    %592 = vmatpush1.msra.mxu0 0.0
    %593 = vmatprep.subr.mxu0 0.0
    %594 = vmatpush1.msra.mxu0 0.0
    %595 = vmatprep.subr.mxu0 0.0
    %596 = vmatpush1.msra.mxu0 0.0
    %597 = vmatprep.subr.mxu0 0.0
    %598 = vmatpush1.msra.mxu0 0.0
    %599 = vmatprep.mubr.f32.mxu0 0.0
    %600 = vmatmul.mubr.f32.gmra.mrb[0].mxu0 %v533
    %v601 = vpop.f32.mrb[0].mxu0
    %v602 = vadd.f32 0.0, %v601
    %v603 = vpop.f32.mrb[0].mxu0
    %604 = vdwg.mxu0
    %v605 = vadd.f32 %v531, %v602
    %v606 = vtanh.pop %v605
    %s607 = scalar_lea.vmem [#allocation3], 16
    %608 = vst.msk [vmem:[%s607] sm:$0xf] %vm183, %v606
    %s609 = sadd.s32 %s74, 5
    %s610 = smul.u32 %s609, 4
    %s611 = sld [smem:[#allocation5 + %s610]]
    %s612 = scalar_lea.vmem [#allocation6], %s611
    %v613 = vld [vmem:[%s612] sm:$0x1]
    %s614 = sadd.s32 %s610, 1
    %s615 = sld [smem:[#allocation5 + %s614]]
    %s616 = scalar_lea.vmem [#allocation6], %s615
    %v617 = vld [vmem:[%s616] sm:$0x1]
    %s618 = sadd.s32 %s610, 2
    %s619 = sld [smem:[#allocation5 + %s618]]
    %s620 = scalar_lea.vmem [#allocation6], %s619
    %v621 = vld [vmem:[%s620] sm:$0x1]
    %s622 = sadd.s32 %s610, 3
    %s623 = sld [smem:[#allocation5 + %s622]]
    %s624 = scalar_lea.vmem [#allocation6], %s623
    %v625 = vld [vmem:[%s624] sm:$0x1]
    %v627 = vrot.slane %v617, 7
    %v630 = vrot.slane %v621, 6
    %v633 = vrot.slane %v625, 5
    %v635 = vsel %vm101, %v613, %v627
    %v636 = vsel %vm103, %v635, %v630
    %v637 = vsel %vm105, %v636, %v633
    %v639 = vsel %vm107, %v606, 0
    %641 = vmatprep.subr.mxu0 0.0
    %642 = vmatpush1.msra.mxu0 %v70
    %643 = vmatprep.subr.mxu0 0.0
    %644 = vmatpush1.msra.mxu0 %v71
    %645 = vmatprep.subr.mxu0 0.0
    %646 = vmatpush1.msra.mxu0 %v72
    %647 = vmatprep.subr.mxu0 0.0
    %648 = vmatpush1.msra.mxu0 %v73
    %649 = vmatprep.subr.mxu0 0.0
    %650 = vmatpush1.msra.mxu0 0.0
    %651 = vmatprep.subr.mxu0 0.0
    %652 = vmatpush1.msra.mxu0 0.0
    %653 = vmatprep.subr.mxu0 0.0
    %654 = vmatpush1.msra.mxu0 0.0
    %655 = vmatprep.subr.mxu0 0.0
    %656 = vmatpush1.msra.mxu0 0.0
    %657 = vmatprep.subr.mxu0 0.0
    %658 = vmatpush1.msra.mxu0 0.0
    %659 = vmatprep.subr.mxu0 0.0
    %660 = vmatpush1.msra.mxu0 0.0
    %661 = vmatprep.subr.mxu0 0.0
    %662 = vmatpush1.msra.mxu0 0.0
    %663 = vmatprep.subr.mxu0 0.0
    %664 = vmatpush1.msra.mxu0 0.0
    %665 = vmatprep.subr.mxu0 0.0
    %666 = vmatpush1.msra.mxu0 0.0
    %667 = vmatprep.subr.mxu0 0.0
    %668 = vmatpush1.msra.mxu0 0.0
    %669 = vmatprep.subr.mxu0 0.0
    %670 = vmatpush1.msra.mxu0 0.0
    %671 = vmatprep.subr.mxu0 0.0
    %672 = vmatpush1.msra.mxu0 0.0
    %673 = vmatprep.subr.mxu0 0.0
    %674 = vmatpush1.msra.mxu0 0.0
    %675 = vmatprep.subr.mxu0 0.0
    %676 = vmatpush1.msra.mxu0 0.0
    %677 = vmatprep.subr.mxu0 0.0
    %678 = vmatpush1.msra.mxu0 0.0
    %679 = vmatprep.subr.mxu0 0.0
    %680 = vmatpush1.msra.mxu0 0.0
    %681 = vmatprep.subr.mxu0 0.0
    %682 = vmatpush1.msra.mxu0 0.0
    %683 = vmatprep.subr.mxu0 0.0
    %684 = vmatpush1.msra.mxu0 0.0
    %685 = vmatprep.subr.mxu0 0.0
    %686 = vmatpush1.msra.mxu0 0.0
    %687 = vmatprep.subr.mxu0 0.0
    %688 = vmatpush1.msra.mxu0 0.0
    %689 = vmatprep.subr.mxu0 0.0
    %690 = vmatpush1.msra.mxu0 0.0
    %691 = vmatprep.subr.mxu0 0.0
    %692 = vmatpush1.msra.mxu0 0.0
    %693 = vmatprep.subr.mxu0 0.0
    %694 = vmatpush1.msra.mxu0 0.0
    %695 = vmatprep.subr.mxu0 0.0
    %696 = vmatpush1.msra.mxu0 0.0
    %697 = vmatprep.subr.mxu0 0.0
    %698 = vmatpush1.msra.mxu0 0.0
    %699 = vmatprep.subr.mxu0 0.0
    %700 = vmatpush1.msra.mxu0 0.0
    %701 = vmatprep.subr.mxu0 0.0
    %702 = vmatpush1.msra.mxu0 0.0
    %703 = vmatprep.subr.mxu0 0.0
    %704 = vmatpush1.msra.mxu0 0.0
    %705 = vmatprep.mubr.f32.mxu0 0.0
    %706 = vmatmul.mubr.f32.gmra.mrb[0].mxu0 %v639
    %v707 = vpop.f32.mrb[0].mxu0
    %v708 = vadd.f32 0.0, %v707
    %v709 = vpop.f32.mrb[0].mxu0
    %710 = vdwg.mxu0
    %v711 = vadd.f32 %v637, %v708
    %v712 = vtanh.pop %v711
    %s713 = scalar_lea.vmem [#allocation3], 20
    %714 = vst.msk [vmem:[%s713] sm:$0xf] %vm183, %v712
    %s715 = sadd.s32 %s74, 6
    %s716 = smul.u32 %s715, 4
    %s717 = sld [smem:[#allocation5 + %s716]]
    %s718 = scalar_lea.vmem [#allocation6], %s717
    %v719 = vld [vmem:[%s718] sm:$0x1]
    %s720 = sadd.s32 %s716, 1
    %s721 = sld [smem:[#allocation5 + %s720]]
    %s722 = scalar_lea.vmem [#allocation6], %s721
    %v723 = vld [vmem:[%s722] sm:$0x1]
    %s724 = sadd.s32 %s716, 2
    %s725 = sld [smem:[#allocation5 + %s724]]
    %s726 = scalar_lea.vmem [#allocation6], %s725
    %v727 = vld [vmem:[%s726] sm:$0x1]
    %s728 = sadd.s32 %s716, 3
    %s729 = sld [smem:[#allocation5 + %s728]]
    %s730 = scalar_lea.vmem [#allocation6], %s729
    %v731 = vld [vmem:[%s730] sm:$0x1]
    %v733 = vrot.slane %v723, 7
    %v736 = vrot.slane %v727, 6
    %v739 = vrot.slane %v731, 5
    %v741 = vsel %vm101, %v719, %v733
    %v742 = vsel %vm103, %v741, %v736
    %v743 = vsel %vm105, %v742, %v739
    %v745 = vsel %vm107, %v712, 0
    %747 = vmatprep.subr.mxu0 0.0
    %748 = vmatpush1.msra.mxu0 %v70
    %749 = vmatprep.subr.mxu0 0.0
    %750 = vmatpush1.msra.mxu0 %v71
    %751 = vmatprep.subr.mxu0 0.0
    %752 = vmatpush1.msra.mxu0 %v72
    %753 = vmatprep.subr.mxu0 0.0
    %754 = vmatpush1.msra.mxu0 %v73
    %755 = vmatprep.subr.mxu0 0.0
    %756 = vmatpush1.msra.mxu0 0.0
    %757 = vmatprep.subr.mxu0 0.0
    %758 = vmatpush1.msra.mxu0 0.0
    %759 = vmatprep.subr.mxu0 0.0
    %760 = vmatpush1.msra.mxu0 0.0
    %761 = vmatprep.subr.mxu0 0.0
    %762 = vmatpush1.msra.mxu0 0.0
    %763 = vmatprep.subr.mxu0 0.0
    %764 = vmatpush1.msra.mxu0 0.0
    %765 = vmatprep.subr.mxu0 0.0
    %766 = vmatpush1.msra.mxu0 0.0
    %767 = vmatprep.subr.mxu0 0.0
    %768 = vmatpush1.msra.mxu0 0.0
    %769 = vmatprep.subr.mxu0 0.0
    %770 = vmatpush1.msra.mxu0 0.0
    %771 = vmatprep.subr.mxu0 0.0
    %772 = vmatpush1.msra.mxu0 0.0
    %773 = vmatprep.subr.mxu0 0.0
    %774 = vmatpush1.msra.mxu0 0.0
    %775 = vmatprep.subr.mxu0 0.0
    %776 = vmatpush1.msra.mxu0 0.0
    %777 = vmatprep.subr.mxu0 0.0
    %778 = vmatpush1.msra.mxu0 0.0
    %779 = vmatprep.subr.mxu0 0.0
    %780 = vmatpush1.msra.mxu0 0.0
    %781 = vmatprep.subr.mxu0 0.0
    %782 = vmatpush1.msra.mxu0 0.0
    %783 = vmatprep.subr.mxu0 0.0
    %784 = vmatpush1.msra.mxu0 0.0
    %785 = vmatprep.subr.mxu0 0.0
    %786 = vmatpush1.msra.mxu0 0.0
    %787 = vmatprep.subr.mxu0 0.0
    %788 = vmatpush1.msra.mxu0 0.0
    %789 = vmatprep.subr.mxu0 0.0
    %790 = vmatpush1.msra.mxu0 0.0
    %791 = vmatprep.subr.mxu0 0.0
    %792 = vmatpush1.msra.mxu0 0.0
    %793 = vmatprep.subr.mxu0 0.0
    %794 = vmatpush1.msra.mxu0 0.0
    %795 = vmatprep.subr.mxu0 0.0
    %796 = vmatpush1.msra.mxu0 0.0
    %797 = vmatprep.subr.mxu0 0.0
    %798 = vmatpush1.msra.mxu0 0.0
    %799 = vmatprep.subr.mxu0 0.0
    %800 = vmatpush1.msra.mxu0 0.0
    %801 = vmatprep.subr.mxu0 0.0
    %802 = vmatpush1.msra.mxu0 0.0
    %803 = vmatprep.subr.mxu0 0.0
    %804 = vmatpush1.msra.mxu0 0.0
    %805 = vmatprep.subr.mxu0 0.0
    %806 = vmatpush1.msra.mxu0 0.0
    %807 = vmatprep.subr.mxu0 0.0
    %808 = vmatpush1.msra.mxu0 0.0
    %809 = vmatprep.subr.mxu0 0.0
    %810 = vmatpush1.msra.mxu0 0.0
    %811 = vmatprep.mubr.f32.mxu0 0.0
    %812 = vmatmul.mubr.f32.gmra.mrb[0].mxu0 %v745
    %v813 = vpop.f32.mrb[0].mxu0
    %v814 = vadd.f32 0.0, %v813
    %v815 = vpop.f32.mrb[0].mxu0
    %816 = vdwg.mxu0
    %v817 = vadd.f32 %v743, %v814
    %v818 = vtanh.pop %v817
    %s819 = scalar_lea.vmem [#allocation3], 24
    %820 = vst.msk [vmem:[%s819] sm:$0xf] %vm183, %v818
    %s821 = sadd.s32 %s74, 7
    %s822 = smul.u32 %s821, 4
    %s823 = sld [smem:[#allocation5 + %s822]]
    %s824 = scalar_lea.vmem [#allocation6], %s823
    %v825 = vld [vmem:[%s824] sm:$0x1]
    %s826 = sadd.s32 %s822, 1
    %s827 = sld [smem:[#allocation5 + %s826]]
    %s828 = scalar_lea.vmem [#allocation6], %s827
    %v829 = vld [vmem:[%s828] sm:$0x1]
    %s830 = sadd.s32 %s822, 2
    %s831 = sld [smem:[#allocation5 + %s830]]
    %s832 = scalar_lea.vmem [#allocation6], %s831
    %v833 = vld [vmem:[%s832] sm:$0x1]
    %s834 = sadd.s32 %s822, 3
    %s835 = sld [smem:[#allocation5 + %s834]]
    %s836 = scalar_lea.vmem [#allocation6], %s835
    %v837 = vld [vmem:[%s836] sm:$0x1]
    %v839 = vrot.slane %v829, 7
    %v842 = vrot.slane %v833, 6
    %v845 = vrot.slane %v837, 5
    %v847 = vsel %vm101, %v825, %v839
    %v848 = vsel %vm103, %v847, %v842
    %v849 = vsel %vm105, %v848, %v845
    %v851 = vsel %vm107, %v818, 0
    %853 = vmatprep.subr.mxu0 0.0
    %854 = vmatpush1.msra.mxu0 %v70
    %855 = vmatprep.subr.mxu0 0.0
    %856 = vmatpush1.msra.mxu0 %v71
    %857 = vmatprep.subr.mxu0 0.0
    %858 = vmatpush1.msra.mxu0 %v72
    %859 = vmatprep.subr.mxu0 0.0
    %860 = vmatpush1.msra.mxu0 %v73
    %861 = vmatprep.subr.mxu0 0.0
    %862 = vmatpush1.msra.mxu0 0.0
    %863 = vmatprep.subr.mxu0 0.0
    %864 = vmatpush1.msra.mxu0 0.0
    %865 = vmatprep.subr.mxu0 0.0
    %866 = vmatpush1.msra.mxu0 0.0
    %867 = vmatprep.subr.mxu0 0.0
    %868 = vmatpush1.msra.mxu0 0.0
    %869 = vmatprep.subr.mxu0 0.0
    %870 = vmatpush1.msra.mxu0 0.0
    %871 = vmatprep.subr.mxu0 0.0
    %872 = vmatpush1.msra.mxu0 0.0
    %873 = vmatprep.subr.mxu0 0.0
    %874 = vmatpush1.msra.mxu0 0.0
    %875 = vmatprep.subr.mxu0 0.0
    %876 = vmatpush1.msra.mxu0 0.0
    %877 = vmatprep.subr.mxu0 0.0
    %878 = vmatpush1.msra.mxu0 0.0
    %879 = vmatprep.subr.mxu0 0.0
    %880 = vmatpush1.msra.mxu0 0.0
    %881 = vmatprep.subr.mxu0 0.0
    %882 = vmatpush1.msra.mxu0 0.0
    %883 = vmatprep.subr.mxu0 0.0
    %884 = vmatpush1.msra.mxu0 0.0
    %885 = vmatprep.subr.mxu0 0.0
    %886 = vmatpush1.msra.mxu0 0.0
    %887 = vmatprep.subr.mxu0 0.0
    %888 = vmatpush1.msra.mxu0 0.0
    %889 = vmatprep.subr.mxu0 0.0
    %890 = vmatpush1.msra.mxu0 0.0
    %891 = vmatprep.subr.mxu0 0.0
    %892 = vmatpush1.msra.mxu0 0.0
    %893 = vmatprep.subr.mxu0 0.0
    %894 = vmatpush1.msra.mxu0 0.0
    %895 = vmatprep.subr.mxu0 0.0
    %896 = vmatpush1.msra.mxu0 0.0
    %897 = vmatprep.subr.mxu0 0.0
    %898 = vmatpush1.msra.mxu0 0.0
    %899 = vmatprep.subr.mxu0 0.0
    %900 = vmatpush1.msra.mxu0 0.0
    %901 = vmatprep.subr.mxu0 0.0
    %902 = vmatpush1.msra.mxu0 0.0
    %903 = vmatprep.subr.mxu0 0.0
    %904 = vmatpush1.msra.mxu0 0.0
    %905 = vmatprep.subr.mxu0 0.0
    %906 = vmatpush1.msra.mxu0 0.0
    %907 = vmatprep.subr.mxu0 0.0
    %908 = vmatpush1.msra.mxu0 0.0
    %909 = vmatprep.subr.mxu0 0.0
    %910 = vmatpush1.msra.mxu0 0.0
    %911 = vmatprep.subr.mxu0 0.0
    %912 = vmatpush1.msra.mxu0 0.0
    %913 = vmatprep.subr.mxu0 0.0
    %914 = vmatpush1.msra.mxu0 0.0
    %915 = vmatprep.subr.mxu0 0.0
    %916 = vmatpush1.msra.mxu0 0.0
    %917 = vmatprep.mubr.f32.mxu0 0.0
    %918 = vmatmul.mubr.f32.gmra.mrb[0].mxu0 %v851
    %v919 = vpop.f32.mrb[0].mxu0
    %v920 = vadd.f32 0.0, %v919
    %v921 = vpop.f32.mrb[0].mxu0
    %922 = vdwg.mxu0
    %v923 = vadd.f32 %v849, %v920
    %v924 = vtanh.pop %v923
    %s925 = scalar_lea.vmem [#allocation3], 28
    %926 = vst.msk [vmem:[%s925] sm:$0xf] %vm183, %v924
    %927 = vst.msk [vmem:[#allocation2] sm:$0xf] %vm183, %v924
    %v928 = vld [vmem:[#allocation3] sm:$0xf]
    %v929 = vld [vmem:[#allocation3 + $0x4] sm:$0xf]
    %v930 = vld [vmem:[#allocation3 + $0x8] sm:$0xf]
    %v931 = vld [vmem:[#allocation3 + $0xc] sm:$0xf]
    %v932 = vld [vmem:[#allocation3 + $0x10] sm:$0xf]
    %v933 = vld [vmem:[#allocation3 + $0x14] sm:$0xf]
    %v934 = vld [vmem:[#allocation3 + $0x18] sm:$0xf]
    %v935 = vld [vmem:[#allocation3 + $0x1c] sm:$0xf]
    %v936 = vld [vmem:[#allocation11] sm:$0xff]
    %v937 = vld [vmem:[#allocation11 + $0x8] sm:$0xff]
    %v938 = vld [vmem:[#allocation11 + $0x10] sm:$0xff]
    %v939 = vld [vmem:[#allocation11 + $0x18] sm:$0xff]
    %v940 = vld [vmem:[%s4] sm:$0x1]
    %v942 = vlaneseq
    %v943 = vshrl.u32 %v942, 7
    %v944 = vsub.s32 0, %v943
    %v945 = vrot.slane %v940, %v944
    %v954 = vcombine.low %v928, %v929
    %v955 = vcombine.low %v930, %v931
    %v956 = vcombine.low %v932, %v933
    %v957 = vcombine.low %v934, %v935
    %v958 = vcombine.low %v945, %v945
    %v960 = vsel %vm107, %v954, 0
    %v962 = vsel %vm107, %v955, 0
    %v964 = vsel %vm107, %v956, 0
    %v966 = vsel %vm107, %v957, 0
    %968 = vmatprep.subr.mxu0 0.0
    %969 = vmatpush1.msra.mxu0 %v936
    %970 = vmatprep.subr.mxu0 0.0
    %971 = vmatpush1.msra.mxu0 %v937
    %972 = vmatprep.subr.mxu0 0.0
    %973 = vmatpush1.msra.mxu0 %v938
    %974 = vmatprep.subr.mxu0 0.0
    %975 = vmatpush1.msra.mxu0 %v939
    %976 = vmatprep.subr.mxu0 0.0
    %977 = vmatpush1.msra.mxu0 0.0
    %978 = vmatprep.subr.mxu0 0.0
    %979 = vmatpush1.msra.mxu0 0.0
    %980 = vmatprep.subr.mxu0 0.0
    %981 = vmatpush1.msra.mxu0 0.0
    %982 = vmatprep.subr.mxu0 0.0
    %983 = vmatpush1.msra.mxu0 0.0
    %984 = vmatprep.subr.mxu0 0.0
    %985 = vmatpush1.msra.mxu0 0.0
    %986 = vmatprep.subr.mxu0 0.0
    %987 = vmatpush1.msra.mxu0 0.0
    %988 = vmatprep.subr.mxu0 0.0
    %989 = vmatpush1.msra.mxu0 0.0
    %990 = vmatprep.subr.mxu0 0.0
    %991 = vmatpush1.msra.mxu0 0.0
    %992 = vmatprep.subr.mxu0 0.0
    %993 = vmatpush1.msra.mxu0 0.0
    %994 = vmatprep.subr.mxu0 0.0
    %995 = vmatpush1.msra.mxu0 0.0
    %996 = vmatprep.subr.mxu0 0.0
    %997 = vmatpush1.msra.mxu0 0.0
    %998 = vmatprep.subr.mxu0 0.0
    %999 = vmatpush1.msra.mxu0 0.0
    %1000 = vmatprep.subr.mxu0 0.0
    %1001 = vmatpush1.msra.mxu0 0.0
    %1002 = vmatprep.subr.mxu0 0.0
    %1003 = vmatpush1.msra.mxu0 0.0
    %1004 = vmatprep.subr.mxu0 0.0
    %1005 = vmatpush1.msra.mxu0 0.0
    %1006 = vmatprep.subr.mxu0 0.0
    %1007 = vmatpush1.msra.mxu0 0.0
    %1008 = vmatprep.subr.mxu0 0.0
    %1009 = vmatpush1.msra.mxu0 0.0
    %1010 = vmatprep.subr.mxu0 0.0
    %1011 = vmatpush1.msra.mxu0 0.0
    %1012 = vmatprep.subr.mxu0 0.0
    %1013 = vmatpush1.msra.mxu0 0.0
    %1014 = vmatprep.subr.mxu0 0.0
    %1015 = vmatpush1.msra.mxu0 0.0
    %1016 = vmatprep.subr.mxu0 0.0
    %1017 = vmatpush1.msra.mxu0 0.0
    %1018 = vmatprep.subr.mxu0 0.0
    %1019 = vmatpush1.msra.mxu0 0.0
    %1020 = vmatprep.subr.mxu0 0.0
    %1021 = vmatpush1.msra.mxu0 0.0
    %1022 = vmatprep.subr.mxu0 0.0
    %1023 = vmatpush1.msra.mxu0 0.0
    %1024 = vmatprep.subr.mxu0 0.0
    %1025 = vmatpush1.msra.mxu0 0.0
    %1026 = vmatprep.subr.mxu0 0.0
    %1027 = vmatpush1.msra.mxu0 0.0
    %1028 = vmatprep.subr.mxu0 0.0
    %1029 = vmatpush1.msra.mxu0 0.0
    %1030 = vmatprep.subr.mxu0 0.0
    %1031 = vmatpush1.msra.mxu0 0.0
    %1032 = vmatprep.mubr.f32.mxu0 0.0
    %1033 = vmatmul.mubr.f32.gmra.mrb[0].mxu0 %v960
    %v1034 = vpop.f32.mrb[0].mxu0
    %v1035 = vadd.f32 %v958, %v1034
    %v1036 = vpop.f32.mrb[0].mxu0
    %1037 = vmatprep.mubr.f32.mxu0 0.0
    %1038 = vmatmul.mubr.f32.gmra.mrb[0].mxu0 %v962
    %v1039 = vpop.f32.mrb[0].mxu0
    %v1040 = vadd.f32 %v958, %v1039
    %v1041 = vpop.f32.mrb[0].mxu0
    %1042 = vmatprep.mubr.f32.mxu0 0.0
    %1043 = vmatmul.mubr.f32.gmra.mrb[0].mxu0 %v964
    %v1044 = vpop.f32.mrb[0].mxu0
    %v1045 = vadd.f32 %v958, %v1044
    %v1046 = vpop.f32.mrb[0].mxu0
    %1047 = vmatprep.mubr.f32.mxu0 0.0
    %1048 = vmatmul.mubr.f32.gmra.mrb[0].mxu0 %v966
    %v1049 = vpop.f32.mrb[0].mxu0
    %v1050 = vadd.f32 %v958, %v1049
    %v1051 = vpop.f32.mrb[0].mxu0
    %1052 = vdwg.mxu0
    %v1057 = vcombine.high %v1035, %v1035
    %v1058 = vcombine.high %v1040, %v1040
    %v1059 = vcombine.high %v1045, %v1045
    %v1060 = vcombine.high %v1050, %v1050
    %vm1065 = vcmask 1043456
    %v1066 = vsel %vm1065, %v1035, -inf
    %1067 = vmax.xlane.f32.xlu0 %v1066
    %v1068 = vpop.xlane.xlu0 %1067
    %v1069 = vsel %vm1065, %v1057, -inf
    %1070 = vmax.xlane.f32.xlu0 %v1069
    %v1071 = vpop.xlane.xlu0 %1070
    %v1072 = vsel %vm1065, %v1040, -inf
    %1073 = vmax.xlane.f32.xlu0 %v1072
    %v1074 = vpop.xlane.xlu0 %1073
    %v1075 = vsel %vm1065, %v1058, -inf
    %1076 = vmax.xlane.f32.xlu0 %v1075
    %v1077 = vpop.xlane.xlu0 %1076
    %v1078 = vsel %vm1065, %v1045, -inf
    %1079 = vmax.xlane.f32.xlu0 %v1078
    %v1080 = vpop.xlane.xlu0 %1079
    %v1081 = vsel %vm1065, %v1059, -inf
    %1082 = vmax.xlane.f32.xlu0 %v1081
    %v1083 = vpop.xlane.xlu0 %1082
    %v1084 = vsel %vm1065, %v1050, -inf
    %1085 = vmax.xlane.f32.xlu0 %v1084
    %v1086 = vpop.xlane.xlu0 %1085
    %v1087 = vsel %vm1065, %v1060, -inf
    %1088 = vmax.xlane.f32.xlu0 %v1087
    %v1089 = vpop.xlane.xlu0 %1088
    %v1090 = vsub.f32 %v1035, %v1068
    %v1091 = vsub.f32 %v1057, %v1071
    %v1092 = vsub.f32 %v1040, %v1074
    %v1093 = vsub.f32 %v1058, %v1077
    %v1094 = vsub.f32 %v1045, %v1080
    %v1095 = vsub.f32 %v1059, %v1083
    %v1096 = vsub.f32 %v1050, %v1086
    %v1097 = vsub.f32 %v1060, %v1089
    %v1098 = vmul.f32 %v1090, 1.442695
    %v1099 = vpow.pop %v1098
    %v1100 = vmul.f32 %v1091, 1.442695
    %v1101 = vpow.pop %v1100
    %v1102 = vmul.f32 %v1092, 1.442695
    %v1103 = vpow.pop %v1102
    %v1104 = vmul.f32 %v1093, 1.442695
    %v1105 = vpow.pop %v1104
    %v1106 = vmul.f32 %v1094, 1.442695
    %v1107 = vpow.pop %v1106
    %v1108 = vmul.f32 %v1095, 1.442695
    %v1109 = vpow.pop %v1108
    %v1110 = vmul.f32 %v1096, 1.442695
    %v1111 = vpow.pop %v1110
    %v1112 = vmul.f32 %v1097, 1.442695
    %v1113 = vpow.pop %v1112
    %v1114 = vsel %vm1065, %v1099, 0.0
    %1115 = vadd.xlane.f32.xlu0 %v1114
    %v1116 = vpop.xlane.xlu0 %1115
    %v1117 = vsel %vm1065, %v1101, 0.0
    %1118 = vadd.xlane.f32.xlu0 %v1117
    %v1119 = vpop.xlane.xlu0 %1118
    %v1120 = vsel %vm1065, %v1103, 0.0
    %1121 = vadd.xlane.f32.xlu0 %v1120
    %v1122 = vpop.xlane.xlu0 %1121
    %v1123 = vsel %vm1065, %v1105, 0.0
    %1124 = vadd.xlane.f32.xlu0 %v1123
    %v1125 = vpop.xlane.xlu0 %1124
    %v1126 = vsel %vm1065, %v1107, 0.0
    %1127 = vadd.xlane.f32.xlu0 %v1126
    %v1128 = vpop.xlane.xlu0 %1127
    %v1129 = vsel %vm1065, %v1109, 0.0
    %1130 = vadd.xlane.f32.xlu0 %v1129
    %v1131 = vpop.xlane.xlu0 %1130
    %v1132 = vsel %vm1065, %v1111, 0.0
    %1133 = vadd.xlane.f32.xlu0 %v1132
    %v1134 = vpop.xlane.xlu0 %1133
    %v1135 = vsel %vm1065, %v1113, 0.0
    %1136 = vadd.xlane.f32.xlu0 %v1135
    %v1137 = vpop.xlane.xlu0 %1136
    %v1138 = vlog2.pop %v1116
    %v1139 = vmul.f32 %v1138, 0.6931472
    %v1140 = vlog2.pop %v1119
    %v1141 = vmul.f32 %v1140, 0.6931472
    %v1142 = vlog2.pop %v1122
    %v1143 = vmul.f32 %v1142, 0.6931472
    %v1144 = vlog2.pop %v1125
    %v1145 = vmul.f32 %v1144, 0.6931472
    %v1146 = vlog2.pop %v1128
    %v1147 = vmul.f32 %v1146, 0.6931472
    %v1148 = vlog2.pop %v1131
    %v1149 = vmul.f32 %v1148, 0.6931472
    %v1150 = vlog2.pop %v1134
    %v1151 = vmul.f32 %v1150, 0.6931472
    %v1152 = vlog2.pop %v1137
    %v1153 = vmul.f32 %v1152, 0.6931472
    %v1154 = vsub.f32 %v1090, %v1139
    %v1155 = vsub.f32 %v1091, %v1141
    %v1156 = vsub.f32 %v1092, %v1143
    %v1157 = vsub.f32 %v1093, %v1145
    %v1158 = vsub.f32 %v1094, %v1147
    %v1159 = vsub.f32 %v1095, %v1149
    %v1160 = vsub.f32 %v1096, %v1151
    %v1161 = vsub.f32 %v1097, %v1153
    %1162 = vst [vmem:[#allocation12] sm:$0xf] %v1154
    %1163 = vst [vmem:[#allocation12 + $0x4] sm:$0xf] %v1155
    %1164 = vst [vmem:[#allocation12 + $0x8] sm:$0xf] %v1156
    %1165 = vst [vmem:[#allocation12 + $0xc] sm:$0xf] %v1157
    %1166 = vst [vmem:[#allocation12 + $0x10] sm:$0xf] %v1158
    %1167 = vst [vmem:[#allocation12 + $0x14] sm:$0xf] %v1159
    %1168 = vst [vmem:[#allocation12 + $0x18] sm:$0xf] %v1160
    %1169 = vst [vmem:[#allocation12 + $0x1c] sm:$0xf] %v1161
    // Predicated region
    $region34: #{tpu_custom_call.1} parent=1 // pred_check
      _
    $region35: #{tpu_custom_call.1} parent=1 // pred_check_branch
      %1171 = sbr.rel (0) target = $region37
    $region36: #{tpu_custom_call.1} parent=1 // pred_region
      %s1173 = ssub.s32 512, 512
      %1174 = vsyncadd [#allocation8], %s1173
      %s1175 = sshll.u32 [#allocation12], 4
      %s1176 = int_to_ptr.vmem [resolvable:$true] %s1175
      %1181 = dma.vmem_to_hbm [thread:$0]  %s1176, 512, %s5, [#allocation8], 64, 64, 4
    $region37: #{tpu_custom_call.1} parent=1 // pred_fallthru
      _
    // Predicated region
    $region38: #{tpu_custom_call.1} parent=1 // pred_check
      _
    $region39: #{tpu_custom_call.1} parent=1 // pred_check_branch
      %1183 = sbr.rel (0) target = $region41
    $region40: #{tpu_custom_call.1} parent=1 // pred_region
      %1184 = dma.done [#allocation8], 512
    $region41: #{tpu_custom_call.1} parent=1 // pred_fallthru
      _
    %1185 = vsyncpa [#allocation7], 1
    %1186 = vsyncpa [#allocation10], 1
    %1187 = vsyncpa [#allocation8], 1

</llo_original>
